<compile_context>
chip_gen: v7x
topology: tpu7x:2x2x1
jax: 0.10.0
libtpu: 0.0.40
codegen_flags: <defaults>
</compile_context>

<pallas_src>
import math

import jax
import jax.numpy as jnp
from jax import lax
from jax.experimental import pallas as pl
from jax.experimental.pallas import tpu as pltpu


# ----------------------------------------------------------------------------
# Fused kernel: qkv projection + LoRA k/v update + multi-head softmax
# attention + output projection, one batch block per grid step.
# ----------------------------------------------------------------------------
def make_attention_kernel(num_heads, head_dim, block_b, seq_len, tr,
                          compute_dtype, approx_softmax):
    C = num_heads * head_dim
    M = block_b * seq_len
    cdt = compute_dtype
    f32 = jnp.float32

    def kernel(x_ref, wqkv_ref, a_all_ref, bk_ref, bv_ref, wproj_ref,
               bproj_ref, o_ref, q_scr, k_scr, v_scr):
        # Fold the batch block into the matmul M dimension (rows).
        x = x_ref[...].reshape(M, C)                      # input / compute dtype

        # qkv projection.  wqkv is pre-transposed to (C, 3C) on the host and the
        # softmax scale is already folded into its q columns, so this is a plain
        # lhs-last x rhs-first MXU matmul with f32 accumulation.
        qkv = jnp.dot(x, wqkv_ref[...], preferred_element_type=f32)   # (M, 3C)

        # Fused LoRA delta: one skinny A matmul for BOTH k and v (A_k/A_v merged
        # on the host into (C, 2*Tr)), then two (Tr, C) B matmuls.
        xa = jnp.dot(x, a_all_ref[...], preferred_element_type=f32).astype(cdt)
        dk = jnp.dot(xa[:, :tr], bk_ref[...], preferred_element_type=f32)  # (M, C)
        dv = jnp.dot(xa[:, tr:], bv_ref[...], preferred_element_type=f32)  # (M, C)

        # Deliberate compute-dtype spill of q/k/v to VMEM scratch: bounds vreg
        # pressure (the (M, 3C) f32 qkv value dies here), halves spill bytes in
        # bf16 mode, and turns every later per-head access into a cheap static
        # ref slice (strided VMEM load) instead of a live-value lane slice.
        q_scr[...] = qkv[:, :C].astype(cdt)
        k_scr[...] = (qkv[:, C:2 * C] + dk).astype(cdt)
        v_scr[...] = (qkv[:, 2 * C:] + dv).astype(cdt)

        # Per-(batch-row, head) softmax attention.  Each head's (N, N) score
        # tile lives only within its iteration; per-head PV results are
        # concatenated in registers so the projection operand and the final
        # store are lane-dense (no masked partial stores).
        row_blocks = []
        for b in range(block_b):
            r0, r1 = b * seq_len, (b + 1) * seq_len
            head_outs = []
            for h in range(num_heads):
                c0, c1 = h * head_dim, (h + 1) * head_dim
                qh = q_scr[r0:r1, c0:c1]                  # (N, Dh) ref slices
                kh = k_scr[r0:r1, c0:c1]
                vh = v_scr[r0:r1, c0:c1]
                s = lax.dot_general(qh, kh, (((1,), (1,)), ((), ())),
                                    preferred_element_type=f32)        # (N, N)
                s = s - jnp.max(s, axis=-1, keepdims=True)
                p = jnp.exp(s)
                inv = pl.reciprocal(jnp.sum(p, axis=-1, keepdims=True),
                                    approx=approx_softmax)
                p = (p * inv).astype(cdt)
                head_outs.append(
                    jnp.dot(p, vh, preferred_element_type=f32).astype(cdt))
            row = (head_outs[0] if num_heads == 1
                   else jnp.concatenate(head_outs, axis=-1))           # (N, C)
            row_blocks.append(row)
        attn = (row_blocks[0] if block_b == 1
                else jnp.concatenate(row_blocks, axis=0))               # (M, C)

        # Output projection (wproj pre-transposed to (C, C)) + bias, then one
        # full-width lane-dense store.
        proj = jnp.dot(attn, wproj_ref[...], preferred_element_type=f32)
        proj = proj + bproj_ref[...]                      # (1, C) f32 broadcast
        o_ref[...] = proj.reshape(o_ref.shape).astype(o_ref.dtype)

    return kernel


# ----------------------------------------------------------------------------
# Wrapper: Attention_LoRA.forward(x, task)   (eval mode, dropout = identity)
# ----------------------------------------------------------------------------
def attention_lora_forward(x, params, task, num_heads, *, block_b=1,
                           approx_softmax=False, single_buffer_weights=False,
                           vmem_limit_mb=64):
    """Pallas implementation of Attention_LoRA.forward(x, task).

    `task`, `num_heads`, `block_b` (and the remaining keyword knobs) must be
    static.  Pass bf16 `x` to run all MXU matmuls in bf16 (softmax math and
    accumulation stay f32).

    Per-generation tuning:
      v5e : raise block_b so block_b*N >= 128, vmem_limit_mb up to ~96.
      v6e : raise block_b so block_b*N >= 256, vmem_limit_mb up to ~96.
      v7x : keep block_b <= B/2 (grid >= 2 for both TensorCores),
            vmem_limit_mb ~= 48-56, single_buffer_weights=True (invariant
            weights need no double buffering).
    """
    B, N, C = x.shape
    assert C % num_heads == 0 and B % block_b == 0
    head_dim = C // num_heads
    scale = head_dim ** (-0.5)
    cdt = x.dtype

    n_used = task + 1                        # static
    r = params["lora_A_k"].shape[1]
    tr = n_used * r

    # ---- Host-side weight prep (runs under jit, OUTSIDE the kernel) ---------
    # Pre-transpose big weights so in-kernel matmuls need no RHS transpose, and
    # fold the softmax scale into the q columns of wqkv.
    wqkv_t = jnp.transpose(params["wqkv"])                       # (C, 3C)
    wqkv_t = jnp.concatenate([wqkv_t[:, :C] * scale, wqkv_t[:, C:]], axis=1)
    wqkv_t = wqkv_t.astype(cdt)
    wproj_t = jnp.transpose(params["wproj"]).astype(cdt)         # (C, C)
    bproj = params["bproj"].reshape(1, C).astype(jnp.float32)

    # Active LoRA tasks concatenated along the rank axis; A_k/A_v merged so the
    # kernel does a single (C, 2*Tr) LoRA-A matmul.
    #   A_cat[t*r + i, c] = A[t, i, c]   (pure reshape)
    #   B_cat[t*r + i, c] = B[t, c, i]   (tiny relayout, few KiB)
    a_k = params["lora_A_k"][:n_used].reshape(tr, C)
    a_v = params["lora_A_v"][:n_used].reshape(tr, C)
    a_all = jnp.transpose(jnp.concatenate([a_k, a_v], axis=0)).astype(cdt)  # (C, 2Tr)
    b_k = jnp.transpose(params["lora_B_k"][:n_used], (0, 2, 1)
                        ).reshape(tr, C).astype(cdt)
    b_v = jnp.transpose(params["lora_B_v"][:n_used], (0, 2, 1)
                        ).reshape(tr, C).astype(cdt)
    # Note: for fully weight-stationary inference one can instead fold
    # delta = B_cat.T @ A_cat into the k/v rows of wqkv here and drop the four
    # LoRA operands / in-kernel matmuls entirely.

    kernel = make_attention_kernel(num_heads, head_dim, block_b, N, tr, cdt,
                                   approx_softmax)
    const = lambda b: (0, 0)                 # invariant weights: DMA'd once
    # Invariant weights never change across the grid; single-buffer them on
    # VMEM-tight parts (v7x) to halve their footprint.
    wkw = dict(pipeline_mode=pl.Buffered(1)) if single_buffer_weights else {}
    wspec = lambda shape: pl.BlockSpec(shape, const, **wkw)

    return pl.pallas_call(
        kernel,
        out_shape=jax.ShapeDtypeStruct((B, N, C), x.dtype),
        grid_spec=pltpu.PrefetchScalarGridSpec(
            num_scalar_prefetch=0,
            grid=(B // block_b,),
            in_specs=[
                pl.BlockSpec((block_b, N, C), lambda b: (b, 0, 0)),
                wspec((C, 3 * C)),           # wqkv (pre-transposed, scaled q)
                wspec((C, 2 * tr)),          # merged LoRA A
                wspec((tr, C)),              # LoRA B_k (rank-concatenated)
                wspec((tr, C)),              # LoRA B_v
                wspec((C, C)),               # wproj (pre-transposed)
                wspec((1, C)),               # proj bias (f32)
            ],
            out_specs=pl.BlockSpec((block_b, N, C), lambda b: (b, 0, 0)),
            scratch_shapes=[
                pltpu.VMEM((block_b * N, C), cdt),   # q
                pltpu.VMEM((block_b * N, C), cdt),   # k
                pltpu.VMEM((block_b * N, C), cdt),   # v
            ]),
        compiler_params=pltpu.CompilerParams(
            dimension_semantics=("parallel",),       # megacore-friendly (v7x)
            vmem_limit_bytes=vmem_limit_mb * 1024 * 1024),
    )(x, wqkv_t, a_all, b_k, b_v, wproj_t, bproj)


# ----------------------------------------------------------------------------
# Pure-JAX reference (mirrors the PyTorch forward, eval mode, no hooks/feats)
# ----------------------------------------------------------------------------
def reference_forward(x, params, task, num_heads):
    B, N, C = x.shape
    Dh = C // num_heads
    scale = Dh ** (-0.5)

    qkv = x @ params["wqkv"].T                                   # (B, N, 3C)
    qkv = qkv.reshape(B, N, 3, num_heads, Dh).transpose(2, 0, 3, 1, 4)
    q, k, v = qkv[0], qkv[1], qkv[2]                             # (B, H, N, Dh)

    wk = jnp.sum(jnp.stack([params["lora_B_k"][t] @ params["lora_A_k"][t]
                            for t in range(task + 1)]), axis=0)
    wv = jnp.sum(jnp.stack([params["lora_B_v"][t] @ params["lora_A_v"][t]
                            for t in range(task + 1)]), axis=0)
    k = k + (x @ wk.T).reshape(B, N, num_heads, Dh).transpose(0, 2, 1, 3)
    v = v + (x @ wv.T).reshape(B, N, num_heads, Dh).transpose(0, 2, 1, 3)

    attn = (q @ jnp.swapaxes(k, -2, -1)) * scale
    attn = jax.nn.softmax(attn, axis=-1)
    out = (attn @ v).transpose(0, 2, 1, 3).reshape(B, N, C)
    out = out @ params["wproj"].T + params["bproj"]
    return out


# ----------------------------------------------------------------------------
# Main
# ----------------------------------------------------------------------------
if __name__ == "__main__":
    # Small, layout-friendly shapes consistent with the module
    # (C multiple of 128, N multiple of 8, head_dim = 64, rank = module default)
    B, N, C = 2, 16, 256
    num_heads = 4          # head_dim = 64
    r = 64
    n_tasks = 3
    task = 1               # -> 2 active LoRA tasks, Tr = 128

    key = jax.random.PRNGKey(0)
    keys = jax.random.split(key, 8)

    def init(k, shape, fan_in):
        bound = 1.0 / math.sqrt(fan_in)
        return jax.random.uniform(k, shape, jnp.float32, -bound, bound)

    params = {
        # nn.Linear(dim, 3*dim, bias=False).weight -> (3C, C)
        "wqkv": init(keys[0], (3 * C, C), C),
        # nn.Linear(dim, dim).weight / .bias
        "wproj": init(keys[1], (C, C), C),
        "bproj": init(keys[2], (C,), C),
        # LoRA stacks: A: Linear(dim, r).weight -> (r, C); B: Linear(r, dim).weight -> (C, r)
        # (nonzero deterministic init so the LoRA path is actually exercised)
        "lora_A_k": init(keys[3], (n_tasks, r, C), C),
        "lora_B_k": init(keys[4], (n_tasks, C, r), r),
        "lora_A_v": init(keys[5], (n_tasks, r, C), C),
        "lora_B_v": init(keys[6], (n_tasks, C, r), r),
    }
    x = jax.random.normal(keys[7], (B, N, C), jnp.float32)

    # TODO(synk): get_feat / get_cur_feat running-covariance buffers and
    # register_hook (backward gradient / attention-map capture) are stateful /
    # autograd-only side effects and are not part of the forward kernel.

    fwd = jax.jit(attention_lora_forward,
                  static_argnames=("task", "num_heads", "block_b",
                                   "approx_softmax", "single_buffer_weights",
                                   "vmem_limit_mb"))

    # --- f32 path: exact check against the reference -------------------------
    out = jax.block_until_ready(fwd(x, params, task=task, num_heads=num_heads))
    ref = reference_forward(x, params, task, num_heads)
    assert out.shape == (B, N, C)
    assert jnp.allclose(out, ref, rtol=1e-4, atol=1e-4), (
        f"f32 max abs err {jnp.max(jnp.abs(out - ref))}")

    # --- bf16 path: MXU matmuls in bf16, softmax/accumulation in f32 ---------
    x_bf = x.astype(jnp.bfloat16)
    out_bf = jax.block_until_ready(
        fwd(x_bf, params, task=task, num_heads=num_heads))
    params_rounded = jax.tree_util.tree_map(
        lambda a: a.astype(jnp.bfloat16).astype(jnp.float32), params)
    ref_bf = reference_forward(x_bf.astype(jnp.float32), params_rounded,
                               task, num_heads)
    assert jnp.allclose(out_bf.astype(jnp.float32), ref_bf,
                        rtol=5e-2, atol=5e-2), (
        f"bf16 max abs err "
        f"{jnp.max(jnp.abs(out_bf.astype(jnp.float32) - ref_bf))}")

    print("KERNEL_OK")
</pallas_src>

<mosaic_0001>
module attributes {stable_mosaic.version = 11 : i64} {
  func.func @kernel(%arg0: i32, %arg1: memref<1x16x256xf32, #tpu.memory_space<vmem>>, %arg2: memref<256x768xf32, #tpu.memory_space<vmem>>, %arg3: memref<256x256xf32, #tpu.memory_space<vmem>>, %arg4: memref<128x256xf32, #tpu.memory_space<vmem>>, %arg5: memref<128x256xf32, #tpu.memory_space<vmem>>, %arg6: memref<256x256xf32, #tpu.memory_space<vmem>>, %arg7: memref<1x256xf32, #tpu.memory_space<vmem>>, %arg8: memref<1x16x256xf32, #tpu.memory_space<vmem>>, %arg9: memref<16x256xf32, #tpu.memory_space<vmem>>, %arg10: memref<16x256xf32, #tpu.memory_space<vmem>>, %arg11: memref<16x256xf32, #tpu.memory_space<vmem>>) attributes {dimension_semantics = [#tpu.dimension_semantics<parallel>], iteration_bounds = array<i64: 2>, scalar_prefetch = 0 : i64, scratch_operands = 3 : i64, tpu.core_type = #tpu.core_type<tc>, window_params = [{transform_indices = @transform_0, window_bounds = array<i64: 1, 16, 256>}, {pipeline_mode = #tpu.pipeline_mode<synchronous>, transform_indices = @transform_1, window_bounds = array<i64: 256, 768>}, {pipeline_mode = #tpu.pipeline_mode<synchronous>, transform_indices = @transform_2, window_bounds = array<i64: 256, 256>}, {pipeline_mode = #tpu.pipeline_mode<synchronous>, transform_indices = @transform_3, window_bounds = array<i64: 128, 256>}, {pipeline_mode = #tpu.pipeline_mode<synchronous>, transform_indices = @transform_4, window_bounds = array<i64: 128, 256>}, {pipeline_mode = #tpu.pipeline_mode<synchronous>, transform_indices = @transform_5, window_bounds = array<i64: 256, 256>}, {pipeline_mode = #tpu.pipeline_mode<synchronous>, transform_indices = @transform_6, window_bounds = array<i64: 1, 256>}, {transform_indices = @transform_7, window_bounds = array<i64: 1, 16, 256>}]} {
    %c0 = arith.constant 0 : index
    %c0_0 = arith.constant 0 : index
    %c0_1 = arith.constant 0 : index
    %0 = vector.load %arg1[%c0, %c0_0, %c0_1] : memref<1x16x256xf32, #tpu.memory_space<vmem>>, vector<1x16x256xf32>
    %1 = vector.shape_cast %0 : vector<1x16x256xf32> to vector<16x256xf32>
    %c0_2 = arith.constant 0 : index
    %c0_3 = arith.constant 0 : index
    %2 = vector.load %arg2[%c0_2, %c0_3] : memref<256x768xf32, #tpu.memory_space<vmem>>, vector<256x768xf32>
    %cst = arith.constant dense<0.000000e+00> : vector<16x768xf32>
    %3 = tpu.matmul %1, %2, %cst {dimension_numbers = #tpu.dot_dimension_numbers<[1], [0], [0], [1], [0, 0, 1, 1], [], []>} : vector<16x256xf32>, vector<256x768xf32>, vector<16x768xf32> -> vector<16x768xf32>
    %c0_4 = arith.constant 0 : index
    %c0_5 = arith.constant 0 : index
    %4 = vector.load %arg3[%c0_4, %c0_5] : memref<256x256xf32, #tpu.memory_space<vmem>>, vector<256x256xf32>
    %cst_6 = arith.constant dense<0.000000e+00> : vector<16x256xf32>
    %5 = tpu.matmul %1, %4, %cst_6 {dimension_numbers = #tpu.dot_dimension_numbers<[1], [0], [0], [1], [0, 0, 1, 1], [], []>} : vector<16x256xf32>, vector<256x256xf32>, vector<16x256xf32> -> vector<16x256xf32>
    %6 = vector.extract_strided_slice %5 {offsets = [0, 0], sizes = [16, 128], strides = [1, 1]} : vector<16x256xf32> to vector<16x128xf32>
    %c0_7 = arith.constant 0 : index
    %c0_8 = arith.constant 0 : index
    %7 = vector.load %arg4[%c0_7, %c0_8] : memref<128x256xf32, #tpu.memory_space<vmem>>, vector<128x256xf32>
    %cst_9 = arith.constant dense<0.000000e+00> : vector<16x256xf32>
    %8 = tpu.matmul %6, %7, %cst_9 {dimension_numbers = #tpu.dot_dimension_numbers<[1], [0], [0], [1], [0, 0, 1, 1], [], []>} : vector<16x128xf32>, vector<128x256xf32>, vector<16x256xf32> -> vector<16x256xf32>
    %9 = vector.extract_strided_slice %5 {offsets = [0, 128], sizes = [16, 128], strides = [1, 1]} : vector<16x256xf32> to vector<16x128xf32>
    %c0_10 = arith.constant 0 : index
    %c0_11 = arith.constant 0 : index
    %10 = vector.load %arg5[%c0_10, %c0_11] : memref<128x256xf32, #tpu.memory_space<vmem>>, vector<128x256xf32>
    %cst_12 = arith.constant dense<0.000000e+00> : vector<16x256xf32>
    %11 = tpu.matmul %9, %10, %cst_12 {dimension_numbers = #tpu.dot_dimension_numbers<[1], [0], [0], [1], [0, 0, 1, 1], [], []>} : vector<16x128xf32>, vector<128x256xf32>, vector<16x256xf32> -> vector<16x256xf32>
    %12 = vector.extract_strided_slice %3 {offsets = [0, 0], sizes = [16, 256], strides = [1, 1]} : vector<16x768xf32> to vector<16x256xf32>
    %c0_13 = arith.constant 0 : index
    %c0_14 = arith.constant 0 : index
    %13 = vector.load %arg9[%c0_13, %c0_14] : memref<16x256xf32, #tpu.memory_space<vmem>>, vector<16x256xf32>
    tpu.vector_store %arg9[%c0_13, %c0_14], %12 {strides = array<i32>} : memref<16x256xf32, #tpu.memory_space<vmem>>, vector<16x256xf32>,
    %14 = vector.extract_strided_slice %3 {offsets = [0, 256], sizes = [16, 256], strides = [1, 1]} : vector<16x768xf32> to vector<16x256xf32>
    %15 = arith.addf %14, %8 : vector<16x256xf32>
    %c0_15 = arith.constant 0 : index
    %c0_16 = arith.constant 0 : index
    %16 = vector.load %arg10[%c0_15, %c0_16] : memref<16x256xf32, #tpu.memory_space<vmem>>, vector<16x256xf32>
    tpu.vector_store %arg10[%c0_15, %c0_16], %15 {strides = array<i32>} : memref<16x256xf32, #tpu.memory_space<vmem>>, vector<16x256xf32>,
    %17 = vector.extract_strided_slice %3 {offsets = [0, 512], sizes = [16, 256], strides = [1, 1]} : vector<16x768xf32> to vector<16x256xf32>
    %18 = arith.addf %17, %11 : vector<16x256xf32>
    %c0_17 = arith.constant 0 : index
    %c0_18 = arith.constant 0 : index
    %19 = vector.load %arg11[%c0_17, %c0_18] : memref<16x256xf32, #tpu.memory_space<vmem>>, vector<16x256xf32>
    tpu.vector_store %arg11[%c0_17, %c0_18], %18 {strides = array<i32>} : memref<16x256xf32, #tpu.memory_space<vmem>>, vector<16x256xf32>,
    %c0_19 = arith.constant 0 : index
    %c0_20 = arith.constant 0 : index
    %20 = vector.load %arg9[%c0_19, %c0_20] : memref<16x256xf32, #tpu.memory_space<vmem>>, vector<16x64xf32>
    %c0_21 = arith.constant 0 : index
    %c0_22 = arith.constant 0 : index
    %21 = vector.load %arg10[%c0_21, %c0_22] : memref<16x256xf32, #tpu.memory_space<vmem>>, vector<16x64xf32>
    %c0_23 = arith.constant 0 : index
    %c0_24 = arith.constant 0 : index
    %22 = vector.load %arg11[%c0_23, %c0_24] : memref<16x256xf32, #tpu.memory_space<vmem>>, vector<16x64xf32>
    %cst_25 = arith.constant dense<0.000000e+00> : vector<16x16xf32>
    %23 = tpu.matmul %20, %21, %cst_25 {dimension_numbers = #tpu.dot_dimension_numbers<[1], [1], [0], [0], [0, 0, 1, 0], [], []>} : vector<16x64xf32>, vector<16x64xf32>, vector<16x16xf32> -> vector<16x16xf32>
    %cst_26 = arith.constant dense<0xFF800000> : vector<16xf32>
    %24 = vector.multi_reduction <maximumf>, %23, %cst_26 [1] : vector<16x16xf32> to vector<16xf32>
    %25 = vector.shape_cast %24 : vector<16xf32> to vector<16x1xf32>
    %26 = vector.broadcast %25 : vector<16x1xf32> to vector<16x16xf32>
    %27 = arith.subf %23, %26 : vector<16x16xf32>
    %28 = math.exp %27 : vector<16x16xf32>
    %cst_27 = arith.constant dense<0.000000e+00> : vector<16xf32>
    %29 = vector.multi_reduction <add>, %28, %cst_27 [1] : vector<16x16xf32> to vector<16xf32>
    %30 = vector.shape_cast %29 : vector<16xf32> to vector<16x1xf32>
    %31 = tpu.reciprocal %30 : vector<16x1xf32> -> vector<16x1xf32>
    %32 = vector.broadcast %31 : vector<16x1xf32> to vector<16x16xf32>
    %33 = arith.mulf %28, %32 : vector<16x16xf32>
    %cst_28 = arith.constant dense<0.000000e+00> : vector<16x64xf32>
    %34 = tpu.matmul %33, %22, %cst_28 {dimension_numbers = #tpu.dot_dimension_numbers<[1], [0], [0], [1], [0, 0, 1, 1], [], []>} : vector<16x16xf32>, vector<16x64xf32>, vector<16x64xf32> -> vector<16x64xf32>
    %c0_29 = arith.constant 0 : index
    %c64 = arith.constant 64 : index
    %35 = vector.load %arg9[%c0_29, %c64] : memref<16x256xf32, #tpu.memory_space<vmem>>, vector<16x64xf32>
    %c0_30 = arith.constant 0 : index
    %c64_31 = arith.constant 64 : index
    %36 = vector.load %arg10[%c0_30, %c64_31] : memref<16x256xf32, #tpu.memory_space<vmem>>, vector<16x64xf32>
    %c0_32 = arith.constant 0 : index
    %c64_33 = arith.constant 64 : index
    %37 = vector.load %arg11[%c0_32, %c64_33] : memref<16x256xf32, #tpu.memory_space<vmem>>, vector<16x64xf32>
    %cst_34 = arith.constant dense<0.000000e+00> : vector<16x16xf32>
    %38 = tpu.matmul %35, %36, %cst_34 {dimension_numbers = #tpu.dot_dimension_numbers<[1], [1], [0], [0], [0, 0, 1, 0], [], []>} : vector<16x64xf32>, vector<16x64xf32>, vector<16x16xf32> -> vector<16x16xf32>
    %cst_35 = arith.constant dense<0xFF800000> : vector<16xf32>
    %39 = vector.multi_reduction <maximumf>, %38, %cst_35 [1] : vector<16x16xf32> to vector<16xf32>
    %40 = vector.shape_cast %39 : vector<16xf32> to vector<16x1xf32>
    %41 = vector.broadcast %40 : vector<16x1xf32> to vector<16x16xf32>
    %42 = arith.subf %38, %41 : vector<16x16xf32>
    %43 = math.exp %42 : vector<16x16xf32>
    %cst_36 = arith.constant dense<0.000000e+00> : vector<16xf32>
    %44 = vector.multi_reduction <add>, %43, %cst_36 [1] : vector<16x16xf32> to vector<16xf32>
    %45 = vector.shape_cast %44 : vector<16xf32> to vector<16x1xf32>
    %46 = tpu.reciprocal %45 : vector<16x1xf32> -> vector<16x1xf32>
    %47 = vector.broadcast %46 : vector<16x1xf32> to vector<16x16xf32>
    %48 = arith.mulf %43, %47 : vector<16x16xf32>
    %cst_37 = arith.constant dense<0.000000e+00> : vector<16x64xf32>
    %49 = tpu.matmul %48, %37, %cst_37 {dimension_numbers = #tpu.dot_dimension_numbers<[1], [0], [0], [1], [0, 0, 1, 1], [], []>} : vector<16x16xf32>, vector<16x64xf32>, vector<16x64xf32> -> vector<16x64xf32>
    %c0_38 = arith.constant 0 : index
    %c128 = arith.constant 128 : index
    %50 = vector.load %arg9[%c0_38, %c128] : memref<16x256xf32, #tpu.memory_space<vmem>>, vector<16x64xf32>
    %c0_39 = arith.constant 0 : index
    %c128_40 = arith.constant 128 : index
    %51 = vector.load %arg10[%c0_39, %c128_40] : memref<16x256xf32, #tpu.memory_space<vmem>>, vector<16x64xf32>
    %c0_41 = arith.constant 0 : index
    %c128_42 = arith.constant 128 : index
    %52 = vector.load %arg11[%c0_41, %c128_42] : memref<16x256xf32, #tpu.memory_space<vmem>>, vector<16x64xf32>
    %cst_43 = arith.constant dense<0.000000e+00> : vector<16x16xf32>
    %53 = tpu.matmul %50, %51, %cst_43 {dimension_numbers = #tpu.dot_dimension_numbers<[1], [1], [0], [0], [0, 0, 1, 0], [], []>} : vector<16x64xf32>, vector<16x64xf32>, vector<16x16xf32> -> vector<16x16xf32>
    %cst_44 = arith.constant dense<0xFF800000> : vector<16xf32>
    %54 = vector.multi_reduction <maximumf>, %53, %cst_44 [1] : vector<16x16xf32> to vector<16xf32>
    %55 = vector.shape_cast %54 : vector<16xf32> to vector<16x1xf32>
    %56 = vector.broadcast %55 : vector<16x1xf32> to vector<16x16xf32>
    %57 = arith.subf %53, %56 : vector<16x16xf32>
    %58 = math.exp %57 : vector<16x16xf32>
    %cst_45 = arith.constant dense<0.000000e+00> : vector<16xf32>
    %59 = vector.multi_reduction <add>, %58, %cst_45 [1] : vector<16x16xf32> to vector<16xf32>
    %60 = vector.shape_cast %59 : vector<16xf32> to vector<16x1xf32>
    %61 = tpu.reciprocal %60 : vector<16x1xf32> -> vector<16x1xf32>
    %62 = vector.broadcast %61 : vector<16x1xf32> to vector<16x16xf32>
    %63 = arith.mulf %58, %62 : vector<16x16xf32>
    %cst_46 = arith.constant dense<0.000000e+00> : vector<16x64xf32>
    %64 = tpu.matmul %63, %52, %cst_46 {dimension_numbers = #tpu.dot_dimension_numbers<[1], [0], [0], [1], [0, 0, 1, 1], [], []>} : vector<16x16xf32>, vector<16x64xf32>, vector<16x64xf32> -> vector<16x64xf32>
    %c0_47 = arith.constant 0 : index
    %c192 = arith.constant 192 : index
    %65 = vector.load %arg9[%c0_47, %c192] : memref<16x256xf32, #tpu.memory_space<vmem>>, vector<16x64xf32>
    %c0_48 = arith.constant 0 : index
    %c192_49 = arith.constant 192 : index
    %66 = vector.load %arg10[%c0_48, %c192_49] : memref<16x256xf32, #tpu.memory_space<vmem>>, vector<16x64xf32>
    %c0_50 = arith.constant 0 : index
    %c192_51 = arith.constant 192 : index
    %67 = vector.load %arg11[%c0_50, %c192_51] : memref<16x256xf32, #tpu.memory_space<vmem>>, vector<16x64xf32>
    %cst_52 = arith.constant dense<0.000000e+00> : vector<16x16xf32>
    %68 = tpu.matmul %65, %66, %cst_52 {dimension_numbers = #tpu.dot_dimension_numbers<[1], [1], [0], [0], [0, 0, 1, 0], [], []>} : vector<16x64xf32>, vector<16x64xf32>, vector<16x16xf32> -> vector<16x16xf32>
    %cst_53 = arith.constant dense<0xFF800000> : vector<16xf32>
    %69 = vector.multi_reduction <maximumf>, %68, %cst_53 [1] : vector<16x16xf32> to vector<16xf32>
    %70 = vector.shape_cast %69 : vector<16xf32> to vector<16x1xf32>
    %71 = vector.broadcast %70 : vector<16x1xf32> to vector<16x16xf32>
    %72 = arith.subf %68, %71 : vector<16x16xf32>
    %73 = math.exp %72 : vector<16x16xf32>
    %cst_54 = arith.constant dense<0.000000e+00> : vector<16xf32>
    %74 = vector.multi_reduction <add>, %73, %cst_54 [1] : vector<16x16xf32> to vector<16xf32>
    %75 = vector.shape_cast %74 : vector<16xf32> to vector<16x1xf32>
    %76 = tpu.reciprocal %75 : vector<16x1xf32> -> vector<16x1xf32>
    %77 = vector.broadcast %76 : vector<16x1xf32> to vector<16x16xf32>
    %78 = arith.mulf %73, %77 : vector<16x16xf32>
    %cst_55 = arith.constant dense<0.000000e+00> : vector<16x64xf32>
    %79 = tpu.matmul %78, %67, %cst_55 {dimension_numbers = #tpu.dot_dimension_numbers<[1], [0], [0], [1], [0, 0, 1, 1], [], []>} : vector<16x16xf32>, vector<16x64xf32>, vector<16x64xf32> -> vector<16x64xf32>
    %80 = tpu.concatenate %34, %49, %64, %79 in 1 : vector<16x64xf32>, vector<16x64xf32>, vector<16x64xf32>, vector<16x64xf32> -> vector<16x256xf32>
    %c0_56 = arith.constant 0 : index
    %c0_57 = arith.constant 0 : index
    %81 = vector.load %arg6[%c0_56, %c0_57] : memref<256x256xf32, #tpu.memory_space<vmem>>, vector<256x256xf32>
    %cst_58 = arith.constant dense<0.000000e+00> : vector<16x256xf32>
    %82 = tpu.matmul %80, %81, %cst_58 {dimension_numbers = #tpu.dot_dimension_numbers<[1], [0], [0], [1], [0, 0, 1, 1], [], []>} : vector<16x256xf32>, vector<256x256xf32>, vector<16x256xf32> -> vector<16x256xf32>
    %c0_59 = arith.constant 0 : index
    %c0_60 = arith.constant 0 : index
    %83 = vector.load %arg7[%c0_59, %c0_60] : memref<1x256xf32, #tpu.memory_space<vmem>>, vector<1x256xf32>
    %84 = vector.broadcast %83 : vector<1x256xf32> to vector<16x256xf32>
    %85 = arith.addf %82, %84 : vector<16x256xf32>
    %86 = vector.shape_cast %85 : vector<16x256xf32> to vector<1x16x256xf32>
    %c0_61 = arith.constant 0 : index
    %c0_62 = arith.constant 0 : index
    %c0_63 = arith.constant 0 : index
    %87 = vector.load %arg8[%c0_61, %c0_62, %c0_63] : memref<1x16x256xf32, #tpu.memory_space<vmem>>, vector<1x16x256xf32>
    tpu.vector_store %arg8[%c0_61, %c0_62, %c0_63], %86 {strides = array<i32>} : memref<1x16x256xf32, #tpu.memory_space<vmem>>, vector<1x16x256xf32>,
    return
  }
  func.func @transform_0(%arg0: i32) -> (i32, i32, i32) {
    %c0_i32 = arith.constant 0 : i32
    %c0_i32_0 = arith.constant 0 : i32
    %c0_i32_1 = arith.constant 0 : i32
    return %arg0, %c0_i32, %c0_i32_0 : i32, i32, i32
  }
  func.func @transform_1(%arg0: i32) -> (i32, i32) {
    %c0_i32 = arith.constant 0 : i32
    %c0_i32_0 = arith.constant 0 : i32
    %c0_i32_1 = arith.constant 0 : i32
    return %c0_i32, %c0_i32_0 : i32, i32
  }
  func.func @transform_2(%arg0: i32) -> (i32, i32) {
    %c0_i32 = arith.constant 0 : i32
    %c0_i32_0 = arith.constant 0 : i32
    %c0_i32_1 = arith.constant 0 : i32
    return %c0_i32, %c0_i32_0 : i32, i32
  }
  func.func @transform_3(%arg0: i32) -> (i32, i32) {
    %c0_i32 = arith.constant 0 : i32
    %c0_i32_0 = arith.constant 0 : i32
    %c0_i32_1 = arith.constant 0 : i32
    return %c0_i32, %c0_i32_0 : i32, i32
  }
  func.func @transform_4(%arg0: i32) -> (i32, i32) {
    %c0_i32 = arith.constant 0 : i32
    %c0_i32_0 = arith.constant 0 : i32
    %c0_i32_1 = arith.constant 0 : i32
    return %c0_i32, %c0_i32_0 : i32, i32
  }
  func.func @transform_5(%arg0: i32) -> (i32, i32) {
    %c0_i32 = arith.constant 0 : i32
    %c0_i32_0 = arith.constant 0 : i32
    %c0_i32_1 = arith.constant 0 : i32
    return %c0_i32, %c0_i32_0 : i32, i32
  }
  func.func @transform_6(%arg0: i32) -> (i32, i32) {
    %c0_i32 = arith.constant 0 : i32
    %c0_i32_0 = arith.constant 0 : i32
    %c0_i32_1 = arith.constant 0 : i32
    return %c0_i32, %c0_i32_0 : i32, i32
  }
  func.func @transform_7(%arg0: i32) -> (i32, i32, i32) {
    %c0_i32 = arith.constant 0 : i32
    %c0_i32_0 = arith.constant 0 : i32
    %c0_i32_1 = arith.constant 0 : i32
    return %arg0, %c0_i32, %c0_i32_0 : i32, i32, i32
  }
}

</mosaic_0001>

<llo_original>
// kernel: attention_lora_forward.1
$region0: #{attention_lora_forward.1}
  #allocation0 [shape = 'u32[]', space=smem, size = 0x4, offset = 0x4, fixed_abs, tag = 'smem constant byte address 0x4 - core index']
  #allocation1 [shape = 'u32[144,128]{1,0:T(1,128)}', space=vmem, size = 0x12000, scoped, tag = 'internal scratch']
  #allocation2 [shape = 'f32[16,256]{1,0:T(8,128)}', space=vmem, size = 0x4000, scoped, tag = 'scratch operand']
  #allocation3 [shape = 'f32[16,256]{1,0:T(8,128)}', space=vmem, size = 0x4000, scoped, tag = 'scratch operand']
  #allocation4 [shape = 'f32[16,256]{1,0:T(8,128)}', space=vmem, size = 0x4000, scoped, tag = 'scratch operand']
  %s0 = inlined_call_operand.hbm [shape: f32[2,16,256], index: 0, kind: input, shape index: {}]
  %s1 = inlined_call_operand.hbm [shape: f32[256,768], index: 1, kind: input, shape index: {}]
  %s2 = inlined_call_operand.hbm [shape: f32[256,256], index: 2, kind: input, shape index: {}]
  %s3 = inlined_call_operand.hbm [shape: f32[128,256], index: 3, kind: input, shape index: {}]
  %s4 = inlined_call_operand.hbm [shape: f32[128,256], index: 4, kind: input, shape index: {}]
  %s5 = inlined_call_operand.hbm [shape: f32[256,256], index: 5, kind: input, shape index: {}]
  %s6 = inlined_call_operand.hbm [shape: f32[1,256], index: 6, kind: input, shape index: {}]
  %s7 = inlined_call_operand.hbm [shape: f32[2,16,256], index: 7, kind: output, shape index: {}]
  %s8 = sld [smem:[#allocation0]]
  $region89: #{attention_lora_forward.1} parent=0
    _
  %s10 = ssub.s32 1, %s8
  %s11 = scalar_select 0, %s10, %s8
  $region1: #{attention_lora_forward.1} parent=0
    #allocation5 [shape = 'u8[32768]{0}', space=vmem, size = 0x8000, scoped, tag = 'input window, operand 0']
    #allocation6 [shape = 's32[2]{0}', space=sflag, size = 0x8, scoped, tag = 'scoped memory for attention_lora_forward.1']
    #allocation7 [shape = 's32[2]{0}', space=sflag, size = 0x8, scoped, tag = 'scoped memory for attention_lora_forward.1']
    #allocation8 [shape = 'u8[786432]{0}', space=vmem, size = 0xc0000, scoped, tag = 'input window, operand 1, single buffered']
    #allocation9 [shape = 's32[1]{0}', space=sflag, size = 0x4, scoped, tag = 'scoped memory for attention_lora_forward.1']
    #allocation10 [shape = 'u8[262144]{0}', space=vmem, size = 0x40000, scoped, tag = 'input window, operand 2, single buffered']
    #allocation11 [shape = 'u8[131072]{0}', space=vmem, size = 0x20000, scoped, tag = 'input window, operand 3, single buffered']
    #allocation12 [shape = 's32[1]{0}', space=sflag, size = 0x4, scoped, tag = 'scoped memory for attention_lora_forward.1']
    #allocation13 [shape = 'u8[131072]{0}', space=vmem, size = 0x20000, scoped, tag = 'input window, operand 4, single buffered']
    #allocation14 [shape = 'u8[262144]{0}', space=vmem, size = 0x40000, scoped, tag = 'input window, operand 5, single buffered']
    #allocation15 [shape = 's32[1]{0}', space=sflag, size = 0x4, scoped, tag = 'scoped memory for attention_lora_forward.1']
    #allocation16 [shape = 'u8[1024]{0}', space=vmem, size = 0x400, scoped, tag = 'input window, operand 6, single buffered']
    #allocation17 [shape = 'u8[32768]{0}', space=vmem, size = 0x8000, scoped, tag = 'output window, operand 0']
    %12 = vsyncpa [#allocation6], 0
    %s13 = scalar_lea.sflag [#allocation6], 1
    %14 = vsyncpa %s13, 0
    %15 = vsyncpa [#allocation9], 0
    %16 = vsyncpa [#allocation12], 0
    %17 = vsyncpa [#allocation15], 0
    %18 = vsyncpa [#allocation7], 0
    %s19 = scalar_lea.sflag [#allocation7], 1
    %20 = vsyncpa %s19, 0
    loop: start=0, step=1, limit=4
    $region2: #{attention_lora_forward.1} parent=1 // loop_pre_header
      _
    $region3: #{attention_lora_forward.1} parent=1 // loop_header
      %s22 = sphi 0, %s26
      %p23 = scmp.ge.s32.totalorder %s22, 4
      %s32 = sphi 0, %s34
      %s35 = sphi 0, %s32
      %s36 = sphi 0, %s35
      %s52 = sphi 0, %s36
      %s56 = sphi 0, %s56
      %s58 = sphi 0, %s56
      %s59 = sphi 0, %s58
      %s73 = sphi 0, %s59
      %s77 = sphi 0, %s77
      %s79 = sphi 0, %s77
      %s80 = sphi 0, %s79
      %s94 = sphi 0, %s80
      %s98 = sphi 0, %s98
      %s100 = sphi 0, %s98
      %s101 = sphi 0, %s100
      %s115 = sphi 0, %s101
      %s119 = sphi 0, %s119
      %s121 = sphi 0, %s119
      %s122 = sphi 0, %s121
      %s136 = sphi 0, %s122
      %s140 = sphi 0, %s140
      %s142 = sphi 0, %s140
      %s143 = sphi 0, %s142
      %s157 = sphi 0, %s143
      %s161 = sphi 0, %s161
      %s163 = sphi 0, %s161
      %s164 = sphi 0, %s163
      %s178 = sphi 0, %s164
      %s184 = sphi 0, %s186
      %s187 = sphi 0, %s184
      %s188 = sphi 0, %s187
      %s204 = sphi 0, %s188
    $region4: #{attention_lora_forward.1} parent=1 // loop_header_branch
      %25 = sbr.rel (%p23) target = $region8
    $region5: #{attention_lora_forward.1} parent=1 // loop_body
      %s27 = ssub.s32 %s22, 1
      %s28 = ssub.s32 %s22, 2
      %s29 = sadd.s32 %s22, 1
      %s30 = ssub.s32 %s22, %s29
      %p31 = scmp.eq.s32.totalorder %s30, 0
      %s33 = sadd.s32 %s32, 1
      %s34 = scalar_select %p31, %s32, %s33
      %p37 = pneg %p31
      %p38 = scmp.eq.s32.totalorder %s22, 1
      %p39 = por %p37, %p38
      %p40 = scmp.ne.s32.totalorder %s32, %s35
      %p41 = scmp.eq.s32.totalorder %s22, 0
      %p42 = por %p40, %p41
      %p43 = scmp.ne.s32.totalorder %s32, %s35
      %p44 = scmp.eq.s32.totalorder %s27, 1
      %p45 = por %p43, %p44
      %p46 = scmp.ne.s32.totalorder %s35, %s36
      %p47 = scmp.eq.s32.totalorder %s27, 0
      %p48 = por %p46, %p47
      %p49 = scmp.ne.s32.totalorder %s35, %s36
      %p50 = scmp.eq.s32.totalorder %s28, 1
      %p51 = por %p49, %p50
      %p53 = scmp.ne.s32.totalorder %s36, %s52
      %p54 = scmp.eq.s32.totalorder %s28, 0
      %p55 = por %p53, %p54
      %s57 = sadd.s32 %s56, 1
      %p60 = scmp.eq.s32.totalorder %s22, 1
      %p61 = scmp.ne.s32.totalorder %s56, %s58
      %p62 = scmp.eq.s32.totalorder %s22, 0
      %p63 = por %p61, %p62
      %p64 = scmp.ne.s32.totalorder %s56, %s58
      %p65 = scmp.eq.s32.totalorder %s27, 1
      %p66 = por %p64, %p65
      %p67 = scmp.ne.s32.totalorder %s58, %s59
      %p68 = scmp.eq.s32.totalorder %s27, 0
      %p69 = por %p67, %p68
      %p70 = scmp.ne.s32.totalorder %s58, %s59
      %p71 = scmp.eq.s32.totalorder %s28, 1
      %p72 = por %p70, %p71
      %p74 = scmp.ne.s32.totalorder %s59, %s73
      %p75 = scmp.eq.s32.totalorder %s28, 0
      %p76 = por %p74, %p75
      %s78 = sadd.s32 %s77, 1
      %p81 = scmp.eq.s32.totalorder %s22, 1
      %p82 = scmp.ne.s32.totalorder %s77, %s79
      %p83 = scmp.eq.s32.totalorder %s22, 0
      %p84 = por %p82, %p83
      %p85 = scmp.ne.s32.totalorder %s77, %s79
      %p86 = scmp.eq.s32.totalorder %s27, 1
      %p87 = por %p85, %p86
      %p88 = scmp.ne.s32.totalorder %s79, %s80
      %p89 = scmp.eq.s32.totalorder %s27, 0
      %p90 = por %p88, %p89
      %p91 = scmp.ne.s32.totalorder %s79, %s80
      %p92 = scmp.eq.s32.totalorder %s28, 1
      %p93 = por %p91, %p92
      %p95 = scmp.ne.s32.totalorder %s80, %s94
      %p96 = scmp.eq.s32.totalorder %s28, 0
      %p97 = por %p95, %p96
      %s99 = sadd.s32 %s98, 1
      %p102 = scmp.eq.s32.totalorder %s22, 1
      %p103 = scmp.ne.s32.totalorder %s98, %s100
      %p104 = scmp.eq.s32.totalorder %s22, 0
      %p105 = por %p103, %p104
      %p106 = scmp.ne.s32.totalorder %s98, %s100
      %p107 = scmp.eq.s32.totalorder %s27, 1
      %p108 = por %p106, %p107
      %p109 = scmp.ne.s32.totalorder %s100, %s101
      %p110 = scmp.eq.s32.totalorder %s27, 0
      %p111 = por %p109, %p110
      %p112 = scmp.ne.s32.totalorder %s100, %s101
      %p113 = scmp.eq.s32.totalorder %s28, 1
      %p114 = por %p112, %p113
      %p116 = scmp.ne.s32.totalorder %s101, %s115
      %p117 = scmp.eq.s32.totalorder %s28, 0
      %p118 = por %p116, %p117
      %s120 = sadd.s32 %s119, 1
      %p123 = scmp.eq.s32.totalorder %s22, 1
      %p124 = scmp.ne.s32.totalorder %s119, %s121
      %p125 = scmp.eq.s32.totalorder %s22, 0
      %p126 = por %p124, %p125
      %p127 = scmp.ne.s32.totalorder %s119, %s121
      %p128 = scmp.eq.s32.totalorder %s27, 1
      %p129 = por %p127, %p128
      %p130 = scmp.ne.s32.totalorder %s121, %s122
      %p131 = scmp.eq.s32.totalorder %s27, 0
      %p132 = por %p130, %p131
      %p133 = scmp.ne.s32.totalorder %s121, %s122
      %p134 = scmp.eq.s32.totalorder %s28, 1
      %p135 = por %p133, %p134
      %p137 = scmp.ne.s32.totalorder %s122, %s136
      %p138 = scmp.eq.s32.totalorder %s28, 0
      %p139 = por %p137, %p138
      %s141 = sadd.s32 %s140, 1
      %p144 = scmp.eq.s32.totalorder %s22, 1
      %p145 = scmp.ne.s32.totalorder %s140, %s142
      %p146 = scmp.eq.s32.totalorder %s22, 0
      %p147 = por %p145, %p146
      %p148 = scmp.ne.s32.totalorder %s140, %s142
      %p149 = scmp.eq.s32.totalorder %s27, 1
      %p150 = por %p148, %p149
      %p151 = scmp.ne.s32.totalorder %s142, %s143
      %p152 = scmp.eq.s32.totalorder %s27, 0
      %p153 = por %p151, %p152
      %p154 = scmp.ne.s32.totalorder %s142, %s143
      %p155 = scmp.eq.s32.totalorder %s28, 1
      %p156 = por %p154, %p155
      %p158 = scmp.ne.s32.totalorder %s143, %s157
      %p159 = scmp.eq.s32.totalorder %s28, 0
      %p160 = por %p158, %p159
      %s162 = sadd.s32 %s161, 1
      %p165 = scmp.eq.s32.totalorder %s22, 1
      %p166 = scmp.ne.s32.totalorder %s161, %s163
      %p167 = scmp.eq.s32.totalorder %s22, 0
      %p168 = por %p166, %p167
      %p169 = scmp.ne.s32.totalorder %s161, %s163
      %p170 = scmp.eq.s32.totalorder %s27, 1
      %p171 = por %p169, %p170
      %p172 = scmp.ne.s32.totalorder %s163, %s164
      %p173 = scmp.eq.s32.totalorder %s27, 0
      %p174 = por %p172, %p173
      %p175 = scmp.ne.s32.totalorder %s163, %s164
      %p176 = scmp.eq.s32.totalorder %s28, 1
      %p177 = por %p175, %p176
      %p179 = scmp.ne.s32.totalorder %s164, %s178
      %p180 = scmp.eq.s32.totalorder %s28, 0
      %p181 = por %p179, %p180
      %s182 = ssub.s32 %s22, %s29
      %p183 = scmp.eq.s32.totalorder %s182, 0
      %s185 = sadd.s32 %s184, 1
      %s186 = scalar_select %p183, %s184, %s185
      %p189 = pneg %p183
      %p190 = scmp.eq.s32.totalorder %s22, 1
      %p191 = por %p189, %p190
      %p192 = scmp.ne.s32.totalorder %s184, %s187
      %p193 = scmp.eq.s32.totalorder %s22, 0
      %p194 = por %p192, %p193
      %p195 = scmp.ne.s32.totalorder %s184, %s187
      %p196 = scmp.eq.s32.totalorder %s27, 1
      %p197 = por %p195, %p196
      %p198 = scmp.ne.s32.totalorder %s187, %s188
      %p199 = scmp.eq.s32.totalorder %s27, 0
      %p200 = por %p198, %p199
      %p201 = scmp.ne.s32.totalorder %s187, %s188
      %p202 = scmp.eq.s32.totalorder %s28, 1
      %p203 = por %p201, %p202
      %p205 = scmp.ne.s32.totalorder %s188, %s204
      %p206 = scmp.eq.s32.totalorder %s28, 0
      %p207 = por %p205, %p206
      %p208 = scmp.le.s32.totalorder 1, %s22
      %p209 = scmp.lt.s32.totalorder %s22, 3
      %p210 = pnand %p208, %p209
      %p211 = pneg %p210
      // Predicated region
      $region9: #{attention_lora_forward.1} parent=5 // pred_check
        _
      $region10: #{attention_lora_forward.1} parent=5 // pred_check_branch
        %213 = sbr.rel (%p210) target = $region12
      $region11: #{attention_lora_forward.1} parent=5 // pred_region
        %s214 = ssub.s32 %s22, 1
        // Predicated region
        $region13: #{attention_lora_forward.1} parent=11 // pred_check
          %p215 = pneg %p69
        $region14: #{attention_lora_forward.1} parent=11 // pred_check_branch
          %217 = sbr.rel (%p215) target = $region16
        $region15: #{attention_lora_forward.1} parent=11 // pred_region
          %s219 = ssub.s32 24576, 24576
          %220 = vsyncadd [#allocation9], %s219
          %s221 = sshll.u32 [#allocation8], 4
          %s222 = int_to_ptr.vmem [resolvable:$true] %s221
          %227 = dma.hbm_to_vmem [thread:$0]  %s1, 24576, %s222, [#allocation9], 768, 768, 48
        $region16: #{attention_lora_forward.1} parent=11 // pred_fallthru
          _
        // Predicated region
        $region17: #{attention_lora_forward.1} parent=11 // pred_check
          %p228 = pneg %p90
        $region18: #{attention_lora_forward.1} parent=11 // pred_check_branch
          %230 = sbr.rel (%p228) target = $region20
        $region19: #{attention_lora_forward.1} parent=11 // pred_region
          %s232 = ssub.s32 8192, 8192
          %233 = vsyncadd [#allocation9], %s232
          %s234 = sshll.u32 [#allocation10], 4
          %s235 = int_to_ptr.vmem [resolvable:$true] %s234
          %240 = dma.hbm_to_vmem [thread:$0]  %s2, 8192, %s235, [#allocation9], 256, 256, 16
        $region20: #{attention_lora_forward.1} parent=11 // pred_fallthru
          _
        // Predicated region
        $region21: #{attention_lora_forward.1} parent=11 // pred_check
          %p241 = pneg %p111
        $region22: #{attention_lora_forward.1} parent=11 // pred_check_branch
          %243 = sbr.rel (%p241) target = $region24
        $region23: #{attention_lora_forward.1} parent=11 // pred_region
          %s245 = ssub.s32 4096, 4096
          %246 = vsyncadd [#allocation12], %s245
          %s247 = sshll.u32 [#allocation11], 4
          %s248 = int_to_ptr.vmem [resolvable:$true] %s247
          %253 = dma.hbm_to_vmem [thread:$0]  %s3, 4096, %s248, [#allocation12], 256, 256, 16
        $region24: #{attention_lora_forward.1} parent=11 // pred_fallthru
          _
        // Predicated region
        $region25: #{attention_lora_forward.1} parent=11 // pred_check
          %p254 = pneg %p132
        $region26: #{attention_lora_forward.1} parent=11 // pred_check_branch
          %256 = sbr.rel (%p254) target = $region28
        $region27: #{attention_lora_forward.1} parent=11 // pred_region
          %s258 = ssub.s32 4096, 4096
          %259 = vsyncadd [#allocation12], %s258
          %s260 = sshll.u32 [#allocation13], 4
          %s261 = int_to_ptr.vmem [resolvable:$true] %s260
          %266 = dma.hbm_to_vmem [thread:$0]  %s4, 4096, %s261, [#allocation12], 256, 256, 16
        $region28: #{attention_lora_forward.1} parent=11 // pred_fallthru
          _
        // Predicated region
        $region29: #{attention_lora_forward.1} parent=11 // pred_check
          %p267 = pneg %p153
        $region30: #{attention_lora_forward.1} parent=11 // pred_check_branch
          %269 = sbr.rel (%p267) target = $region32
        $region31: #{attention_lora_forward.1} parent=11 // pred_region
          %s271 = ssub.s32 8192, 8192
          %272 = vsyncadd [#allocation15], %s271
          %s273 = sshll.u32 [#allocation14], 4
          %s274 = int_to_ptr.vmem [resolvable:$true] %s273
          %279 = dma.hbm_to_vmem [thread:$0]  %s5, 8192, %s274, [#allocation15], 256, 256, 16
        $region32: #{attention_lora_forward.1} parent=11 // pred_fallthru
          _
        // Predicated region
        $region33: #{attention_lora_forward.1} parent=11 // pred_check
          %p280 = pneg %p174
        $region34: #{attention_lora_forward.1} parent=11 // pred_check_branch
          %282 = sbr.rel (%p280) target = $region36
        $region35: #{attention_lora_forward.1} parent=11 // pred_region
          %s284 = ssub.s32 32, 32
          %285 = vsyncadd [#allocation15], %s284
          %s287 = sshll.u32 [#allocation16], 4
          %s288 = int_to_ptr.vmem [resolvable:$true] %s287
          %290 = dma.hbm_to_vmem [thread:$0]  %s6, 32, %s288, [#allocation15]
        $region36: #{attention_lora_forward.1} parent=11 // pred_fallthru
          _
      $region12: #{attention_lora_forward.1} parent=5 // pred_fallthru
        _
      %p291 = scmp.lt.s32.totalorder %s22, 2
      // Predicated region
      $region37: #{attention_lora_forward.1} parent=5 // pred_check
        %p292 = pneg %p291
      $region38: #{attention_lora_forward.1} parent=5 // pred_check_branch
        %294 = sbr.rel (%p292) target = $region40
      $region39: #{attention_lora_forward.1} parent=5 // pred_region
        // Predicated region
        $region41: #{attention_lora_forward.1} parent=39 // pred_check
          %p295 = pneg %p42
        $region42: #{attention_lora_forward.1} parent=39 // pred_check_branch
          %297 = sbr.rel (%p295) target = $region44
        $region43: #{attention_lora_forward.1} parent=39 // pred_region
          %s298 = sand.u32 %s32, 1
          %s299 = scalar_lea.sflag [#allocation6], %s298
          %s300 = sand.u32 %s32, 1
          %s301 = smul.addr %s300, 32
          %s302 = scalar_lea.vmem [#allocation5], %s301
          %s304 = ssub.s32 512, 512
          %305 = vsyncadd %s299, %s304
          %s306 = smul.addr %s22, 4
          %s307 = smul.addr %s306, 128
          %s308 = scalar_lea.hbm %s0, %s307
          %s309 = sshll.u32 %s302, 4
          %s310 = int_to_ptr.vmem [resolvable:$true] %s309
          %315 = dma.hbm_to_vmem [thread:$0]  %s308, 512, %s310, %s299, 256, 256, 16
        $region44: #{attention_lora_forward.1} parent=39 // pred_fallthru
          _
      $region40: #{attention_lora_forward.1} parent=5 // pred_fallthru
        _
      %p316 = scmp.le.s32.totalorder 1, %s22
      %p317 = scmp.lt.s32.totalorder %s22, 3
      %p318 = pnand %p316, %p317
      %p319 = pneg %p318
      // Predicated region
      $region45: #{attention_lora_forward.1} parent=5 // pred_check
        _
      $region46: #{attention_lora_forward.1} parent=5 // pred_check_branch
        %321 = sbr.rel (%p318) target = $region48
      $region47: #{attention_lora_forward.1} parent=5 // pred_region
        %s322 = ssub.s32 %s22, 1
        %s323 = sand.u32 %s35, 1
        %s324 = scalar_lea.sflag [#allocation6], %s323
        %s325 = sand.u32 %s35, 1
        %s326 = smul.addr %s325, 32
        %s327 = scalar_lea.vmem [#allocation5], %s326
        // Predicated region
        $region49: #{attention_lora_forward.1} parent=47 // pred_check
          %p328 = pneg %p48
        $region50: #{attention_lora_forward.1} parent=47 // pred_check_branch
          %330 = sbr.rel (%p328) target = $region52
        $region51: #{attention_lora_forward.1} parent=47 // pred_region
          %331 = dma.done %s324, 512
        $region52: #{attention_lora_forward.1} parent=47 // pred_fallthru
          _
        // Predicated region
        $region53: #{attention_lora_forward.1} parent=47 // pred_check
          %p332 = pneg %p69
        $region54: #{attention_lora_forward.1} parent=47 // pred_check_branch
          %334 = sbr.rel (%p332) target = $region56
        $region55: #{attention_lora_forward.1} parent=47 // pred_region
          %335 = dma.done [#allocation9], 24576
        $region56: #{attention_lora_forward.1} parent=47 // pred_fallthru
          _
        // Predicated region
        $region57: #{attention_lora_forward.1} parent=47 // pred_check
          %p336 = pneg %p90
        $region58: #{attention_lora_forward.1} parent=47 // pred_check_branch
          %338 = sbr.rel (%p336) target = $region60
        $region59: #{attention_lora_forward.1} parent=47 // pred_region
          %339 = dma.done [#allocation9], 8192
        $region60: #{attention_lora_forward.1} parent=47 // pred_fallthru
          _
        // Predicated region
        $region61: #{attention_lora_forward.1} parent=47 // pred_check
          %p340 = pneg %p111
        $region62: #{attention_lora_forward.1} parent=47 // pred_check_branch
          %342 = sbr.rel (%p340) target = $region64
        $region63: #{attention_lora_forward.1} parent=47 // pred_region
          %343 = dma.done [#allocation12], 4096
        $region64: #{attention_lora_forward.1} parent=47 // pred_fallthru
          _
        // Predicated region
        $region65: #{attention_lora_forward.1} parent=47 // pred_check
          %p344 = pneg %p132
        $region66: #{attention_lora_forward.1} parent=47 // pred_check_branch
          %346 = sbr.rel (%p344) target = $region68
        $region67: #{attention_lora_forward.1} parent=47 // pred_region
          %347 = dma.done [#allocation12], 4096
        $region68: #{attention_lora_forward.1} parent=47 // pred_fallthru
          _
        // Predicated region
        $region69: #{attention_lora_forward.1} parent=47 // pred_check
          %p348 = pneg %p153
        $region70: #{attention_lora_forward.1} parent=47 // pred_check_branch
          %350 = sbr.rel (%p348) target = $region72
        $region71: #{attention_lora_forward.1} parent=47 // pred_region
          %351 = dma.done [#allocation15], 8192
        $region72: #{attention_lora_forward.1} parent=47 // pred_fallthru
          _
        // Predicated region
        $region73: #{attention_lora_forward.1} parent=47 // pred_check
          %p352 = pneg %p174
        $region74: #{attention_lora_forward.1} parent=47 // pred_check_branch
          %354 = sbr.rel (%p352) target = $region76
        $region75: #{attention_lora_forward.1} parent=47 // pred_region
          %355 = dma.done [#allocation15], 32
        $region76: #{attention_lora_forward.1} parent=47 // pred_fallthru
          _
        %s356 = sand.u32 %s35, 1
        %s357 = scalar_lea.sflag [#allocation6], %s356
        %s358 = sand.u32 %s35, 1
        %s359 = smul.addr %s358, 32
        %s360 = scalar_lea.vmem [#allocation5], %s359
        %p361 = pneg %p48
        %p362 = pneg %p45
        %p363 = pneg %p69
        %p364 = pneg %p66
        %p365 = pneg %p90
        %p366 = pneg %p87
        %p367 = pneg %p111
        %p368 = pneg %p108
        %p369 = pneg %p132
        %p370 = pneg %p129
        %p371 = pneg %p153
        %p372 = pneg %p150
        %p373 = pneg %p174
        %p374 = pneg %p171
        %p375 = pneg %p200
        %p376 = pneg %p197
        %s377 = sand.u32 %s187, 1
        %s378 = scalar_lea.sflag [#allocation7], %s377
        %s379 = sand.u32 %s187, 1
        %s380 = smul.addr %s379, 32
        %s381 = scalar_lea.vmem [#allocation17], %s380
        %v382 = vld [vmem:[%s327] sm:$0xff]
        %v383 = vld [vmem:[%s327 + $0x8] sm:$0xff]
        %v384 = vld [vmem:[%s327 + $0x10] sm:$0xff]
        %v385 = vld [vmem:[%s327 + $0x18] sm:$0xff]
        %v386 = vld [vmem:[#allocation8] sm:$0xff]
        %v387 = vld [vmem:[#allocation8 + $0x8] sm:$0xff]
        %v388 = vld [vmem:[#allocation8 + $0x10] sm:$0xff]
        %v389 = vld [vmem:[#allocation8 + $0x18] sm:$0xff]
        %v390 = vld [vmem:[#allocation8 + $0x20] sm:$0xff]
        %v391 = vld [vmem:[#allocation8 + $0x28] sm:$0xff]
        %v392 = vld [vmem:[#allocation8 + $0x30] sm:$0xff]
        %v393 = vld [vmem:[#allocation8 + $0x38] sm:$0xff]
        %v394 = vld [vmem:[#allocation8 + $0x40] sm:$0xff]
        %v395 = vld [vmem:[#allocation8 + $0x48] sm:$0xff]
        %v396 = vld [vmem:[#allocation8 + $0x50] sm:$0xff]
        %v397 = vld [vmem:[#allocation8 + $0x58] sm:$0xff]
        %v398 = vld [vmem:[#allocation8 + $0x60] sm:$0xff]
        %v399 = vld [vmem:[#allocation8 + $0x68] sm:$0xff]
        %v400 = vld [vmem:[#allocation8 + $0x70] sm:$0xff]
        %v401 = vld [vmem:[#allocation8 + $0x78] sm:$0xff]
        %v402 = vld [vmem:[#allocation8 + $0x80] sm:$0xff]
        %v403 = vld [vmem:[#allocation8 + $0x88] sm:$0xff]
        %v404 = vld [vmem:[#allocation8 + $0x90] sm:$0xff]
        %v405 = vld [vmem:[#allocation8 + $0x98] sm:$0xff]
        %v406 = vld [vmem:[#allocation8 + $0xa0] sm:$0xff]
        %v407 = vld [vmem:[#allocation8 + $0xa8] sm:$0xff]
        %v408 = vld [vmem:[#allocation8 + $0xb0] sm:$0xff]
        %v409 = vld [vmem:[#allocation8 + $0xb8] sm:$0xff]
        %v410 = vld [vmem:[#allocation8 + $0xc0] sm:$0xff]
        %v411 = vld [vmem:[#allocation8 + $0xc8] sm:$0xff]
        %v412 = vld [vmem:[#allocation8 + $0xd0] sm:$0xff]
        %v413 = vld [vmem:[#allocation8 + $0xd8] sm:$0xff]
        %v414 = vld [vmem:[#allocation8 + $0xe0] sm:$0xff]
        %v415 = vld [vmem:[#allocation8 + $0xe8] sm:$0xff]
        %v416 = vld [vmem:[#allocation8 + $0xf0] sm:$0xff]
        %v417 = vld [vmem:[#allocation8 + $0xf8] sm:$0xff]
        %v418 = vld [vmem:[#allocation8 + $0x100] sm:$0xff]
        %v419 = vld [vmem:[#allocation8 + $0x108] sm:$0xff]
        %v420 = vld [vmem:[#allocation8 + $0x110] sm:$0xff]
        %v421 = vld [vmem:[#allocation8 + $0x118] sm:$0xff]
        %v422 = vld [vmem:[#allocation8 + $0x120] sm:$0xff]
        %v423 = vld [vmem:[#allocation8 + $0x128] sm:$0xff]
        %v424 = vld [vmem:[#allocation8 + $0x130] sm:$0xff]
        %v425 = vld [vmem:[#allocation8 + $0x138] sm:$0xff]
        %v426 = vld [vmem:[#allocation8 + $0x140] sm:$0xff]
        %v427 = vld [vmem:[#allocation8 + $0x148] sm:$0xff]
        %v428 = vld [vmem:[#allocation8 + $0x150] sm:$0xff]
        %v429 = vld [vmem:[#allocation8 + $0x158] sm:$0xff]
        %v430 = vld [vmem:[#allocation8 + $0x160] sm:$0xff]
        %v431 = vld [vmem:[#allocation8 + $0x168] sm:$0xff]
        %v432 = vld [vmem:[#allocation8 + $0x170] sm:$0xff]
        %v433 = vld [vmem:[#allocation8 + $0x178] sm:$0xff]
        %v434 = vld [vmem:[#allocation8 + $0x180] sm:$0xff]
        %v435 = vld [vmem:[#allocation8 + $0x188] sm:$0xff]
        %v436 = vld [vmem:[#allocation8 + $0x190] sm:$0xff]
        %v437 = vld [vmem:[#allocation8 + $0x198] sm:$0xff]
        %v438 = vld [vmem:[#allocation8 + $0x1a0] sm:$0xff]
        %v439 = vld [vmem:[#allocation8 + $0x1a8] sm:$0xff]
        %v440 = vld [vmem:[#allocation8 + $0x1b0] sm:$0xff]
        %v441 = vld [vmem:[#allocation8 + $0x1b8] sm:$0xff]
        %v442 = vld [vmem:[#allocation8 + $0x1c0] sm:$0xff]
        %v443 = vld [vmem:[#allocation8 + $0x1c8] sm:$0xff]
        %v444 = vld [vmem:[#allocation8 + $0x1d0] sm:$0xff]
        %v445 = vld [vmem:[#allocation8 + $0x1d8] sm:$0xff]
        %v446 = vld [vmem:[#allocation8 + $0x1e0] sm:$0xff]
        %v447 = vld [vmem:[#allocation8 + $0x1e8] sm:$0xff]
        %v448 = vld [vmem:[#allocation8 + $0x1f0] sm:$0xff]
        %v449 = vld [vmem:[#allocation8 + $0x1f8] sm:$0xff]
        %v450 = vld [vmem:[#allocation8 + $0x200] sm:$0xff]
        %v451 = vld [vmem:[#allocation8 + $0x208] sm:$0xff]
        %v452 = vld [vmem:[#allocation8 + $0x210] sm:$0xff]
        %v453 = vld [vmem:[#allocation8 + $0x218] sm:$0xff]
        %v454 = vld [vmem:[#allocation8 + $0x220] sm:$0xff]
        %v455 = vld [vmem:[#allocation8 + $0x228] sm:$0xff]
        %v456 = vld [vmem:[#allocation8 + $0x230] sm:$0xff]
        %v457 = vld [vmem:[#allocation8 + $0x238] sm:$0xff]
        %v458 = vld [vmem:[#allocation8 + $0x240] sm:$0xff]
        %v459 = vld [vmem:[#allocation8 + $0x248] sm:$0xff]
        %v460 = vld [vmem:[#allocation8 + $0x250] sm:$0xff]
        %v461 = vld [vmem:[#allocation8 + $0x258] sm:$0xff]
        %v462 = vld [vmem:[#allocation8 + $0x260] sm:$0xff]
        %v463 = vld [vmem:[#allocation8 + $0x268] sm:$0xff]
        %v464 = vld [vmem:[#allocation8 + $0x270] sm:$0xff]
        %v465 = vld [vmem:[#allocation8 + $0x278] sm:$0xff]
        %v466 = vld [vmem:[#allocation8 + $0x280] sm:$0xff]
        %v467 = vld [vmem:[#allocation8 + $0x288] sm:$0xff]
        %v468 = vld [vmem:[#allocation8 + $0x290] sm:$0xff]
        %v469 = vld [vmem:[#allocation8 + $0x298] sm:$0xff]
        %v470 = vld [vmem:[#allocation8 + $0x2a0] sm:$0xff]
        %v471 = vld [vmem:[#allocation8 + $0x2a8] sm:$0xff]
        %v472 = vld [vmem:[#allocation8 + $0x2b0] sm:$0xff]
        %v473 = vld [vmem:[#allocation8 + $0x2b8] sm:$0xff]
        %v474 = vld [vmem:[#allocation8 + $0x2c0] sm:$0xff]
        %v475 = vld [vmem:[#allocation8 + $0x2c8] sm:$0xff]
        %v476 = vld [vmem:[#allocation8 + $0x2d0] sm:$0xff]
        %v477 = vld [vmem:[#allocation8 + $0x2d8] sm:$0xff]
        %v478 = vld [vmem:[#allocation8 + $0x2e0] sm:$0xff]
        %v479 = vld [vmem:[#allocation8 + $0x2e8] sm:$0xff]
        %v480 = vld [vmem:[#allocation8 + $0x2f0] sm:$0xff]
        %v481 = vld [vmem:[#allocation8 + $0x2f8] sm:$0xff]
        %v482 = vld [vmem:[#allocation8 + $0x300] sm:$0xff]
        %v483 = vld [vmem:[#allocation8 + $0x308] sm:$0xff]
        %v484 = vld [vmem:[#allocation8 + $0x310] sm:$0xff]
        %v485 = vld [vmem:[#allocation8 + $0x318] sm:$0xff]
        %v486 = vld [vmem:[#allocation8 + $0x320] sm:$0xff]
        %v487 = vld [vmem:[#allocation8 + $0x328] sm:$0xff]
        %v488 = vld [vmem:[#allocation8 + $0x330] sm:$0xff]
        %v489 = vld [vmem:[#allocation8 + $0x338] sm:$0xff]
        %v490 = vld [vmem:[#allocation8 + $0x340] sm:$0xff]
        %v491 = vld [vmem:[#allocation8 + $0x348] sm:$0xff]
        %v492 = vld [vmem:[#allocation8 + $0x350] sm:$0xff]
        %v493 = vld [vmem:[#allocation8 + $0x358] sm:$0xff]
        %v494 = vld [vmem:[#allocation8 + $0x360] sm:$0xff]
        %v495 = vld [vmem:[#allocation8 + $0x368] sm:$0xff]
        %v496 = vld [vmem:[#allocation8 + $0x370] sm:$0xff]
        %v497 = vld [vmem:[#allocation8 + $0x378] sm:$0xff]
        %v498 = vld [vmem:[#allocation8 + $0x380] sm:$0xff]
        %v499 = vld [vmem:[#allocation8 + $0x388] sm:$0xff]
        %v500 = vld [vmem:[#allocation8 + $0x390] sm:$0xff]
        %v501 = vld [vmem:[#allocation8 + $0x398] sm:$0xff]
        %v502 = vld [vmem:[#allocation8 + $0x3a0] sm:$0xff]
        %v503 = vld [vmem:[#allocation8 + $0x3a8] sm:$0xff]
        %v504 = vld [vmem:[#allocation8 + $0x3b0] sm:$0xff]
        %v505 = vld [vmem:[#allocation8 + $0x3b8] sm:$0xff]
        %v506 = vld [vmem:[#allocation8 + $0x3c0] sm:$0xff]
        %v507 = vld [vmem:[#allocation8 + $0x3c8] sm:$0xff]
        %v508 = vld [vmem:[#allocation8 + $0x3d0] sm:$0xff]
        %v509 = vld [vmem:[#allocation8 + $0x3d8] sm:$0xff]
        %v510 = vld [vmem:[#allocation8 + $0x3e0] sm:$0xff]
        %v511 = vld [vmem:[#allocation8 + $0x3e8] sm:$0xff]
        %v512 = vld [vmem:[#allocation8 + $0x3f0] sm:$0xff]
        %v513 = vld [vmem:[#allocation8 + $0x3f8] sm:$0xff]
        %v514 = vld [vmem:[#allocation8 + $0x400] sm:$0xff]
        %v515 = vld [vmem:[#allocation8 + $0x408] sm:$0xff]
        %v516 = vld [vmem:[#allocation8 + $0x410] sm:$0xff]
        %v517 = vld [vmem:[#allocation8 + $0x418] sm:$0xff]
        %v518 = vld [vmem:[#allocation8 + $0x420] sm:$0xff]
        %v519 = vld [vmem:[#allocation8 + $0x428] sm:$0xff]
        %v520 = vld [vmem:[#allocation8 + $0x430] sm:$0xff]
        %v521 = vld [vmem:[#allocation8 + $0x438] sm:$0xff]
        %v522 = vld [vmem:[#allocation8 + $0x440] sm:$0xff]
        %v523 = vld [vmem:[#allocation8 + $0x448] sm:$0xff]
        %v524 = vld [vmem:[#allocation8 + $0x450] sm:$0xff]
        %v525 = vld [vmem:[#allocation8 + $0x458] sm:$0xff]
        %v526 = vld [vmem:[#allocation8 + $0x460] sm:$0xff]
        %v527 = vld [vmem:[#allocation8 + $0x468] sm:$0xff]
        %v528 = vld [vmem:[#allocation8 + $0x470] sm:$0xff]
        %v529 = vld [vmem:[#allocation8 + $0x478] sm:$0xff]
        %v530 = vld [vmem:[#allocation8 + $0x480] sm:$0xff]
        %v531 = vld [vmem:[#allocation8 + $0x488] sm:$0xff]
        %v532 = vld [vmem:[#allocation8 + $0x490] sm:$0xff]
        %v533 = vld [vmem:[#allocation8 + $0x498] sm:$0xff]
        %v534 = vld [vmem:[#allocation8 + $0x4a0] sm:$0xff]
        %v535 = vld [vmem:[#allocation8 + $0x4a8] sm:$0xff]
        %v536 = vld [vmem:[#allocation8 + $0x4b0] sm:$0xff]
        %v537 = vld [vmem:[#allocation8 + $0x4b8] sm:$0xff]
        %v538 = vld [vmem:[#allocation8 + $0x4c0] sm:$0xff]
        %v539 = vld [vmem:[#allocation8 + $0x4c8] sm:$0xff]
        %v540 = vld [vmem:[#allocation8 + $0x4d0] sm:$0xff]
        %v541 = vld [vmem:[#allocation8 + $0x4d8] sm:$0xff]
        %v542 = vld [vmem:[#allocation8 + $0x4e0] sm:$0xff]
        %v543 = vld [vmem:[#allocation8 + $0x4e8] sm:$0xff]
        %v544 = vld [vmem:[#allocation8 + $0x4f0] sm:$0xff]
        %v545 = vld [vmem:[#allocation8 + $0x4f8] sm:$0xff]
        %v546 = vld [vmem:[#allocation8 + $0x500] sm:$0xff]
        %v547 = vld [vmem:[#allocation8 + $0x508] sm:$0xff]
        %v548 = vld [vmem:[#allocation8 + $0x510] sm:$0xff]
        %v549 = vld [vmem:[#allocation8 + $0x518] sm:$0xff]
        %v550 = vld [vmem:[#allocation8 + $0x520] sm:$0xff]
        %v551 = vld [vmem:[#allocation8 + $0x528] sm:$0xff]
        %v552 = vld [vmem:[#allocation8 + $0x530] sm:$0xff]
        %v553 = vld [vmem:[#allocation8 + $0x538] sm:$0xff]
        %v554 = vld [vmem:[#allocation8 + $0x540] sm:$0xff]
        %v555 = vld [vmem:[#allocation8 + $0x548] sm:$0xff]
        %v556 = vld [vmem:[#allocation8 + $0x550] sm:$0xff]
        %v557 = vld [vmem:[#allocation8 + $0x558] sm:$0xff]
        %v558 = vld [vmem:[#allocation8 + $0x560] sm:$0xff]
        %v559 = vld [vmem:[#allocation8 + $0x568] sm:$0xff]
        %v560 = vld [vmem:[#allocation8 + $0x570] sm:$0xff]
        %v561 = vld [vmem:[#allocation8 + $0x578] sm:$0xff]
        %v562 = vld [vmem:[#allocation8 + $0x580] sm:$0xff]
        %v563 = vld [vmem:[#allocation8 + $0x588] sm:$0xff]
        %v564 = vld [vmem:[#allocation8 + $0x590] sm:$0xff]
        %v565 = vld [vmem:[#allocation8 + $0x598] sm:$0xff]
        %v566 = vld [vmem:[#allocation8 + $0x5a0] sm:$0xff]
        %v567 = vld [vmem:[#allocation8 + $0x5a8] sm:$0xff]
        %v568 = vld [vmem:[#allocation8 + $0x5b0] sm:$0xff]
        %v569 = vld [vmem:[#allocation8 + $0x5b8] sm:$0xff]
        %v570 = vld [vmem:[#allocation8 + $0x5c0] sm:$0xff]
        %v571 = vld [vmem:[#allocation8 + $0x5c8] sm:$0xff]
        %v572 = vld [vmem:[#allocation8 + $0x5d0] sm:$0xff]
        %v573 = vld [vmem:[#allocation8 + $0x5d8] sm:$0xff]
        %v574 = vld [vmem:[#allocation8 + $0x5e0] sm:$0xff]
        %v575 = vld [vmem:[#allocation8 + $0x5e8] sm:$0xff]
        %v576 = vld [vmem:[#allocation8 + $0x5f0] sm:$0xff]
        %v577 = vld [vmem:[#allocation8 + $0x5f8] sm:$0xff]
        %578 = vmatprep.subr.mxu0 %v387
        %579 = vmatpush1.msra.mxu0 %v386
        %580 = vmatprep.subr.mxu0 %v393
        %581 = vmatpush1.msra.mxu0 %v392
        %582 = vmatprep.subr.mxu0 %v399
        %583 = vmatpush1.msra.mxu0 %v398
        %584 = vmatprep.subr.mxu0 %v405
        %585 = vmatpush1.msra.mxu0 %v404
        %586 = vmatprep.subr.mxu0 %v411
        %587 = vmatpush1.msra.mxu0 %v410
        %588 = vmatprep.subr.mxu0 %v417
        %589 = vmatpush1.msra.mxu0 %v416
        %590 = vmatprep.subr.mxu0 %v423
        %591 = vmatpush1.msra.mxu0 %v422
        %592 = vmatprep.subr.mxu0 %v429
        %593 = vmatpush1.msra.mxu0 %v428
        %594 = vmatprep.subr.mxu0 %v435
        %595 = vmatpush1.msra.mxu0 %v434
        %596 = vmatprep.subr.mxu0 %v441
        %597 = vmatpush1.msra.mxu0 %v440
        %598 = vmatprep.subr.mxu0 %v447
        %599 = vmatpush1.msra.mxu0 %v446
        %600 = vmatprep.subr.mxu0 %v453
        %601 = vmatpush1.msra.mxu0 %v452
        %602 = vmatprep.subr.mxu0 %v459
        %603 = vmatpush1.msra.mxu0 %v458
        %604 = vmatprep.subr.mxu0 %v465
        %605 = vmatpush1.msra.mxu0 %v464
        %606 = vmatprep.subr.mxu0 %v471
        %607 = vmatpush1.msra.mxu0 %v470
        %608 = vmatprep.subr.mxu0 %v477
        %609 = vmatpush1.msra.mxu0 %v476
        %610 = vmatprep.subr.mxu0 %v483
        %611 = vmatpush1.msra.mxu0 %v482
        %612 = vmatprep.subr.mxu0 %v489
        %613 = vmatpush1.msra.mxu0 %v488
        %614 = vmatprep.subr.mxu0 %v495
        %615 = vmatpush1.msra.mxu0 %v494
        %616 = vmatprep.subr.mxu0 %v501
        %617 = vmatpush1.msra.mxu0 %v500
        %618 = vmatprep.subr.mxu0 %v507
        %619 = vmatpush1.msra.mxu0 %v506
        %620 = vmatprep.subr.mxu0 %v513
        %621 = vmatpush1.msra.mxu0 %v512
        %622 = vmatprep.subr.mxu0 %v519
        %623 = vmatpush1.msra.mxu0 %v518
        %624 = vmatprep.subr.mxu0 %v525
        %625 = vmatpush1.msra.mxu0 %v524
        %626 = vmatprep.subr.mxu0 %v531
        %627 = vmatpush1.msra.mxu0 %v530
        %628 = vmatprep.subr.mxu0 %v537
        %629 = vmatpush1.msra.mxu0 %v536
        %630 = vmatprep.subr.mxu0 %v543
        %631 = vmatpush1.msra.mxu0 %v542
        %632 = vmatprep.subr.mxu0 %v549
        %633 = vmatpush1.msra.mxu0 %v548
        %634 = vmatprep.subr.mxu0 %v555
        %635 = vmatpush1.msra.mxu0 %v554
        %636 = vmatprep.subr.mxu0 %v561
        %637 = vmatpush1.msra.mxu0 %v560
        %638 = vmatprep.subr.mxu0 %v567
        %639 = vmatpush1.msra.mxu0 %v566
        %640 = vmatprep.subr.mxu0 %v573
        %641 = vmatpush1.msra.mxu0 %v572
        %642 = vmatprep.mubr.f32.mxu0 %v383
        %643 = vmatmul.mubr.f32.gmra.mrb[0].mxu0 %v382
        %v644 = vpop.f32.mrb[0].mxu0
        %v645 = vadd.f32 0.0, %v644
        %v646 = vpop.f32.mrb[0].mxu0
        %v647 = vadd.f32 0.0, %v646
        %648 = vmatprep.mubr.f32.mxu0 %v385
        %649 = vmatmul.mubr.f32.gmra.mrb[0].mxu0 %v384
        %v650 = vpop.f32.mrb[0].mxu0
        %v651 = vadd.f32 0.0, %v650
        %v652 = vpop.f32.mrb[0].mxu0
        %v653 = vadd.f32 0.0, %v652
        %654 = vdwg.mxu0
        %655 = vmatprep.subr.mxu0 %v389
        %656 = vmatpush1.msra.mxu0 %v388
        %657 = vmatprep.subr.mxu0 %v395
        %658 = vmatpush1.msra.mxu0 %v394
        %659 = vmatprep.subr.mxu0 %v401
        %660 = vmatpush1.msra.mxu0 %v400
        %661 = vmatprep.subr.mxu0 %v407
        %662 = vmatpush1.msra.mxu0 %v406
        %663 = vmatprep.subr.mxu0 %v413
        %664 = vmatpush1.msra.mxu0 %v412
        %665 = vmatprep.subr.mxu0 %v419
        %666 = vmatpush1.msra.mxu0 %v418
        %667 = vmatprep.subr.mxu0 %v425
        %668 = vmatpush1.msra.mxu0 %v424
        %669 = vmatprep.subr.mxu0 %v431
        %670 = vmatpush1.msra.mxu0 %v430
        %671 = vmatprep.subr.mxu0 %v437
        %672 = vmatpush1.msra.mxu0 %v436
        %673 = vmatprep.subr.mxu0 %v443
        %674 = vmatpush1.msra.mxu0 %v442
        %675 = vmatprep.subr.mxu0 %v449
        %676 = vmatpush1.msra.mxu0 %v448
        %677 = vmatprep.subr.mxu0 %v455
        %678 = vmatpush1.msra.mxu0 %v454
        %679 = vmatprep.subr.mxu0 %v461
        %680 = vmatpush1.msra.mxu0 %v460
        %681 = vmatprep.subr.mxu0 %v467
        %682 = vmatpush1.msra.mxu0 %v466
        %683 = vmatprep.subr.mxu0 %v473
        %684 = vmatpush1.msra.mxu0 %v472
        %685 = vmatprep.subr.mxu0 %v479
        %686 = vmatpush1.msra.mxu0 %v478
        %687 = vmatprep.subr.mxu0 %v485
        %688 = vmatpush1.msra.mxu0 %v484
        %689 = vmatprep.subr.mxu0 %v491
        %690 = vmatpush1.msra.mxu0 %v490
        %691 = vmatprep.subr.mxu0 %v497
        %692 = vmatpush1.msra.mxu0 %v496
        %693 = vmatprep.subr.mxu0 %v503
        %694 = vmatpush1.msra.mxu0 %v502
        %695 = vmatprep.subr.mxu0 %v509
        %696 = vmatpush1.msra.mxu0 %v508
        %697 = vmatprep.subr.mxu0 %v515
        %698 = vmatpush1.msra.mxu0 %v514
        %699 = vmatprep.subr.mxu0 %v521
        %700 = vmatpush1.msra.mxu0 %v520
        %701 = vmatprep.subr.mxu0 %v527
        %702 = vmatpush1.msra.mxu0 %v526
        %703 = vmatprep.subr.mxu0 %v533
        %704 = vmatpush1.msra.mxu0 %v532
        %705 = vmatprep.subr.mxu0 %v539
        %706 = vmatpush1.msra.mxu0 %v538
        %707 = vmatprep.subr.mxu0 %v545
        %708 = vmatpush1.msra.mxu0 %v544
        %709 = vmatprep.subr.mxu0 %v551
        %710 = vmatpush1.msra.mxu0 %v550
        %711 = vmatprep.subr.mxu0 %v557
        %712 = vmatpush1.msra.mxu0 %v556
        %713 = vmatprep.subr.mxu0 %v563
        %714 = vmatpush1.msra.mxu0 %v562
        %715 = vmatprep.subr.mxu0 %v569
        %716 = vmatpush1.msra.mxu0 %v568
        %717 = vmatprep.subr.mxu0 %v575
        %718 = vmatpush1.msra.mxu0 %v574
        %719 = vmatprep.mubr.f32.mxu0 %v383
        %720 = vmatmul.mubr.f32.gmra.mrb[0].mxu0 %v382
        %v721 = vpop.f32.mrb[0].mxu0
        %v722 = vadd.f32 0.0, %v721
        %v723 = vpop.f32.mrb[0].mxu0
        %v724 = vadd.f32 0.0, %v723
        %725 = vmatprep.mubr.f32.mxu0 %v385
        %726 = vmatmul.mubr.f32.gmra.mrb[0].mxu0 %v384
        %v727 = vpop.f32.mrb[0].mxu0
        %v728 = vadd.f32 0.0, %v727
        %v729 = vpop.f32.mrb[0].mxu0
        %v730 = vadd.f32 0.0, %v729
        %731 = vdwg.mxu0
        %732 = vmatprep.subr.mxu0 %v391
        %733 = vmatpush1.msra.mxu0 %v390
        %734 = vmatprep.subr.mxu0 %v397
        %735 = vmatpush1.msra.mxu0 %v396
        %736 = vmatprep.subr.mxu0 %v403
        %737 = vmatpush1.msra.mxu0 %v402
        %738 = vmatprep.subr.mxu0 %v409
        %739 = vmatpush1.msra.mxu0 %v408
        %740 = vmatprep.subr.mxu0 %v415
        %741 = vmatpush1.msra.mxu0 %v414
        %742 = vmatprep.subr.mxu0 %v421
        %743 = vmatpush1.msra.mxu0 %v420
        %744 = vmatprep.subr.mxu0 %v427
        %745 = vmatpush1.msra.mxu0 %v426
        %746 = vmatprep.subr.mxu0 %v433
        %747 = vmatpush1.msra.mxu0 %v432
        %748 = vmatprep.subr.mxu0 %v439
        %749 = vmatpush1.msra.mxu0 %v438
        %750 = vmatprep.subr.mxu0 %v445
        %751 = vmatpush1.msra.mxu0 %v444
        %752 = vmatprep.subr.mxu0 %v451
        %753 = vmatpush1.msra.mxu0 %v450
        %754 = vmatprep.subr.mxu0 %v457
        %755 = vmatpush1.msra.mxu0 %v456
        %756 = vmatprep.subr.mxu0 %v463
        %757 = vmatpush1.msra.mxu0 %v462
        %758 = vmatprep.subr.mxu0 %v469
        %759 = vmatpush1.msra.mxu0 %v468
        %760 = vmatprep.subr.mxu0 %v475
        %761 = vmatpush1.msra.mxu0 %v474
        %762 = vmatprep.subr.mxu0 %v481
        %763 = vmatpush1.msra.mxu0 %v480
        %764 = vmatprep.subr.mxu0 %v487
        %765 = vmatpush1.msra.mxu0 %v486
        %766 = vmatprep.subr.mxu0 %v493
        %767 = vmatpush1.msra.mxu0 %v492
        %768 = vmatprep.subr.mxu0 %v499
        %769 = vmatpush1.msra.mxu0 %v498
        %770 = vmatprep.subr.mxu0 %v505
        %771 = vmatpush1.msra.mxu0 %v504
        %772 = vmatprep.subr.mxu0 %v511
        %773 = vmatpush1.msra.mxu0 %v510
        %774 = vmatprep.subr.mxu0 %v517
        %775 = vmatpush1.msra.mxu0 %v516
        %776 = vmatprep.subr.mxu0 %v523
        %777 = vmatpush1.msra.mxu0 %v522
        %778 = vmatprep.subr.mxu0 %v529
        %779 = vmatpush1.msra.mxu0 %v528
        %780 = vmatprep.subr.mxu0 %v535
        %781 = vmatpush1.msra.mxu0 %v534
        %782 = vmatprep.subr.mxu0 %v541
        %783 = vmatpush1.msra.mxu0 %v540
        %784 = vmatprep.subr.mxu0 %v547
        %785 = vmatpush1.msra.mxu0 %v546
        %786 = vmatprep.subr.mxu0 %v553
        %787 = vmatpush1.msra.mxu0 %v552
        %788 = vmatprep.subr.mxu0 %v559
        %789 = vmatpush1.msra.mxu0 %v558
        %790 = vmatprep.subr.mxu0 %v565
        %791 = vmatpush1.msra.mxu0 %v564
        %792 = vmatprep.subr.mxu0 %v571
        %793 = vmatpush1.msra.mxu0 %v570
        %794 = vmatprep.subr.mxu0 %v577
        %795 = vmatpush1.msra.mxu0 %v576
        %796 = vmatprep.mubr.f32.mxu0 %v383
        %797 = vmatmul.mubr.f32.gmra.mrb[0].mxu0 %v382
        %v798 = vpop.f32.mrb[0].mxu0
        %v799 = vadd.f32 0.0, %v798
        %v800 = vpop.f32.mrb[0].mxu0
        %v801 = vadd.f32 0.0, %v800
        %802 = vmatprep.mubr.f32.mxu0 %v385
        %803 = vmatmul.mubr.f32.gmra.mrb[0].mxu0 %v384
        %v804 = vpop.f32.mrb[0].mxu0
        %v805 = vadd.f32 0.0, %v804
        %v806 = vpop.f32.mrb[0].mxu0
        %v807 = vadd.f32 0.0, %v806
        %808 = vdwg.mxu0
        %v809 = vld [vmem:[#allocation10] sm:$0xff]
        %v810 = vld [vmem:[#allocation10 + $0x8] sm:$0xff]
        %v811 = vld [vmem:[#allocation10 + $0x10] sm:$0xff]
        %v812 = vld [vmem:[#allocation10 + $0x18] sm:$0xff]
        %v813 = vld [vmem:[#allocation10 + $0x20] sm:$0xff]
        %v814 = vld [vmem:[#allocation10 + $0x28] sm:$0xff]
        %v815 = vld [vmem:[#allocation10 + $0x30] sm:$0xff]
        %v816 = vld [vmem:[#allocation10 + $0x38] sm:$0xff]
        %v817 = vld [vmem:[#allocation10 + $0x40] sm:$0xff]
        %v818 = vld [vmem:[#allocation10 + $0x48] sm:$0xff]
        %v819 = vld [vmem:[#allocation10 + $0x50] sm:$0xff]
        %v820 = vld [vmem:[#allocation10 + $0x58] sm:$0xff]
        %v821 = vld [vmem:[#allocation10 + $0x60] sm:$0xff]
        %v822 = vld [vmem:[#allocation10 + $0x68] sm:$0xff]
        %v823 = vld [vmem:[#allocation10 + $0x70] sm:$0xff]
        %v824 = vld [vmem:[#allocation10 + $0x78] sm:$0xff]
        %v825 = vld [vmem:[#allocation10 + $0x80] sm:$0xff]
        %v826 = vld [vmem:[#allocation10 + $0x88] sm:$0xff]
        %v827 = vld [vmem:[#allocation10 + $0x90] sm:$0xff]
        %v828 = vld [vmem:[#allocation10 + $0x98] sm:$0xff]
        %v829 = vld [vmem:[#allocation10 + $0xa0] sm:$0xff]
        %v830 = vld [vmem:[#allocation10 + $0xa8] sm:$0xff]
        %v831 = vld [vmem:[#allocation10 + $0xb0] sm:$0xff]
        %v832 = vld [vmem:[#allocation10 + $0xb8] sm:$0xff]
        %v833 = vld [vmem:[#allocation10 + $0xc0] sm:$0xff]
        %v834 = vld [vmem:[#allocation10 + $0xc8] sm:$0xff]
        %v835 = vld [vmem:[#allocation10 + $0xd0] sm:$0xff]
        %v836 = vld [vmem:[#allocation10 + $0xd8] sm:$0xff]
        %v837 = vld [vmem:[#allocation10 + $0xe0] sm:$0xff]
        %v838 = vld [vmem:[#allocation10 + $0xe8] sm:$0xff]
        %v839 = vld [vmem:[#allocation10 + $0xf0] sm:$0xff]
        %v840 = vld [vmem:[#allocation10 + $0xf8] sm:$0xff]
        %v841 = vld [vmem:[#allocation10 + $0x100] sm:$0xff]
        %v842 = vld [vmem:[#allocation10 + $0x108] sm:$0xff]
        %v843 = vld [vmem:[#allocation10 + $0x110] sm:$0xff]
        %v844 = vld [vmem:[#allocation10 + $0x118] sm:$0xff]
        %v845 = vld [vmem:[#allocation10 + $0x120] sm:$0xff]
        %v846 = vld [vmem:[#allocation10 + $0x128] sm:$0xff]
        %v847 = vld [vmem:[#allocation10 + $0x130] sm:$0xff]
        %v848 = vld [vmem:[#allocation10 + $0x138] sm:$0xff]
        %v849 = vld [vmem:[#allocation10 + $0x140] sm:$0xff]
        %v850 = vld [vmem:[#allocation10 + $0x148] sm:$0xff]
        %v851 = vld [vmem:[#allocation10 + $0x150] sm:$0xff]
        %v852 = vld [vmem:[#allocation10 + $0x158] sm:$0xff]
        %v853 = vld [vmem:[#allocation10 + $0x160] sm:$0xff]
        %v854 = vld [vmem:[#allocation10 + $0x168] sm:$0xff]
        %v855 = vld [vmem:[#allocation10 + $0x170] sm:$0xff]
        %v856 = vld [vmem:[#allocation10 + $0x178] sm:$0xff]
        %v857 = vld [vmem:[#allocation10 + $0x180] sm:$0xff]
        %v858 = vld [vmem:[#allocation10 + $0x188] sm:$0xff]
        %v859 = vld [vmem:[#allocation10 + $0x190] sm:$0xff]
        %v860 = vld [vmem:[#allocation10 + $0x198] sm:$0xff]
        %v861 = vld [vmem:[#allocation10 + $0x1a0] sm:$0xff]
        %v862 = vld [vmem:[#allocation10 + $0x1a8] sm:$0xff]
        %v863 = vld [vmem:[#allocation10 + $0x1b0] sm:$0xff]
        %v864 = vld [vmem:[#allocation10 + $0x1b8] sm:$0xff]
        %v865 = vld [vmem:[#allocation10 + $0x1c0] sm:$0xff]
        %v866 = vld [vmem:[#allocation10 + $0x1c8] sm:$0xff]
        %v867 = vld [vmem:[#allocation10 + $0x1d0] sm:$0xff]
        %v868 = vld [vmem:[#allocation10 + $0x1d8] sm:$0xff]
        %v869 = vld [vmem:[#allocation10 + $0x1e0] sm:$0xff]
        %v870 = vld [vmem:[#allocation10 + $0x1e8] sm:$0xff]
        %v871 = vld [vmem:[#allocation10 + $0x1f0] sm:$0xff]
        %v872 = vld [vmem:[#allocation10 + $0x1f8] sm:$0xff]
        %873 = vmatprep.subr.mxu0 %v810
        %874 = vmatpush1.msra.mxu0 %v809
        %875 = vmatprep.subr.mxu0 %v812
        %876 = vmatpush1.msra.mxu0 %v811
        %877 = vmatprep.subr.mxu0 %v814
        %878 = vmatpush1.msra.mxu0 %v813
        %879 = vmatprep.subr.mxu0 %v816
        %880 = vmatpush1.msra.mxu0 %v815
        %881 = vmatprep.subr.mxu0 %v818
        %882 = vmatpush1.msra.mxu0 %v817
        %883 = vmatprep.subr.mxu0 %v820
        %884 = vmatpush1.msra.mxu0 %v819
        %885 = vmatprep.subr.mxu0 %v822
        %886 = vmatpush1.msra.mxu0 %v821
        %887 = vmatprep.subr.mxu0 %v824
        %888 = vmatpush1.msra.mxu0 %v823
        %889 = vmatprep.subr.mxu0 %v826
        %890 = vmatpush1.msra.mxu0 %v825
        %891 = vmatprep.subr.mxu0 %v828
        %892 = vmatpush1.msra.mxu0 %v827
        %893 = vmatprep.subr.mxu0 %v830
        %894 = vmatpush1.msra.mxu0 %v829
        %895 = vmatprep.subr.mxu0 %v832
        %896 = vmatpush1.msra.mxu0 %v831
        %897 = vmatprep.subr.mxu0 %v834
        %898 = vmatpush1.msra.mxu0 %v833
        %899 = vmatprep.subr.mxu0 %v836
        %900 = vmatpush1.msra.mxu0 %v835
        %901 = vmatprep.subr.mxu0 %v838
        %902 = vmatpush1.msra.mxu0 %v837
        %903 = vmatprep.subr.mxu0 %v840
        %904 = vmatpush1.msra.mxu0 %v839
        %905 = vmatprep.subr.mxu0 %v842
        %906 = vmatpush1.msra.mxu0 %v841
        %907 = vmatprep.subr.mxu0 %v844
        %908 = vmatpush1.msra.mxu0 %v843
        %909 = vmatprep.subr.mxu0 %v846
        %910 = vmatpush1.msra.mxu0 %v845
        %911 = vmatprep.subr.mxu0 %v848
        %912 = vmatpush1.msra.mxu0 %v847
        %913 = vmatprep.subr.mxu0 %v850
        %914 = vmatpush1.msra.mxu0 %v849
        %915 = vmatprep.subr.mxu0 %v852
        %916 = vmatpush1.msra.mxu0 %v851
        %917 = vmatprep.subr.mxu0 %v854
        %918 = vmatpush1.msra.mxu0 %v853
        %919 = vmatprep.subr.mxu0 %v856
        %920 = vmatpush1.msra.mxu0 %v855
        %921 = vmatprep.subr.mxu0 %v858
        %922 = vmatpush1.msra.mxu0 %v857
        %923 = vmatprep.subr.mxu0 %v860
        %924 = vmatpush1.msra.mxu0 %v859
        %925 = vmatprep.subr.mxu0 %v862
        %926 = vmatpush1.msra.mxu0 %v861
        %927 = vmatprep.subr.mxu0 %v864
        %928 = vmatpush1.msra.mxu0 %v863
        %929 = vmatprep.subr.mxu0 %v866
        %930 = vmatpush1.msra.mxu0 %v865
        %931 = vmatprep.subr.mxu0 %v868
        %932 = vmatpush1.msra.mxu0 %v867
        %933 = vmatprep.subr.mxu0 %v870
        %934 = vmatpush1.msra.mxu0 %v869
        %935 = vmatprep.subr.mxu0 %v872
        %936 = vmatpush1.msra.mxu0 %v871
        %937 = vmatprep.mubr.f32.mxu0 %v383
        %938 = vmatmul.mubr.f32.gmra.mrb[0].mxu0 %v382
        %v939 = vpop.f32.mrb[0].mxu0
        %v940 = vadd.f32 0.0, %v939
        %v941 = vpop.f32.mrb[0].mxu0
        %v942 = vadd.f32 0.0, %v941
        %943 = vmatprep.mubr.f32.mxu0 %v385
        %944 = vmatmul.mubr.f32.gmra.mrb[0].mxu0 %v384
        %v945 = vpop.f32.mrb[0].mxu0
        %v946 = vadd.f32 0.0, %v945
        %v947 = vpop.f32.mrb[0].mxu0
        %v948 = vadd.f32 0.0, %v947
        %949 = vdwg.mxu0
        %v950 = vld [vmem:[#allocation11] sm:$0xff]
        %v951 = vld [vmem:[#allocation11 + $0x8] sm:$0xff]
        %v952 = vld [vmem:[#allocation11 + $0x10] sm:$0xff]
        %v953 = vld [vmem:[#allocation11 + $0x18] sm:$0xff]
        %v954 = vld [vmem:[#allocation11 + $0x20] sm:$0xff]
        %v955 = vld [vmem:[#allocation11 + $0x28] sm:$0xff]
        %v956 = vld [vmem:[#allocation11 + $0x30] sm:$0xff]
        %v957 = vld [vmem:[#allocation11 + $0x38] sm:$0xff]
        %v958 = vld [vmem:[#allocation11 + $0x40] sm:$0xff]
        %v959 = vld [vmem:[#allocation11 + $0x48] sm:$0xff]
        %v960 = vld [vmem:[#allocation11 + $0x50] sm:$0xff]
        %v961 = vld [vmem:[#allocation11 + $0x58] sm:$0xff]
        %v962 = vld [vmem:[#allocation11 + $0x60] sm:$0xff]
        %v963 = vld [vmem:[#allocation11 + $0x68] sm:$0xff]
        %v964 = vld [vmem:[#allocation11 + $0x70] sm:$0xff]
        %v965 = vld [vmem:[#allocation11 + $0x78] sm:$0xff]
        %v966 = vld [vmem:[#allocation11 + $0x80] sm:$0xff]
        %v967 = vld [vmem:[#allocation11 + $0x88] sm:$0xff]
        %v968 = vld [vmem:[#allocation11 + $0x90] sm:$0xff]
        %v969 = vld [vmem:[#allocation11 + $0x98] sm:$0xff]
        %v970 = vld [vmem:[#allocation11 + $0xa0] sm:$0xff]
        %v971 = vld [vmem:[#allocation11 + $0xa8] sm:$0xff]
        %v972 = vld [vmem:[#allocation11 + $0xb0] sm:$0xff]
        %v973 = vld [vmem:[#allocation11 + $0xb8] sm:$0xff]
        %v974 = vld [vmem:[#allocation11 + $0xc0] sm:$0xff]
        %v975 = vld [vmem:[#allocation11 + $0xc8] sm:$0xff]
        %v976 = vld [vmem:[#allocation11 + $0xd0] sm:$0xff]
        %v977 = vld [vmem:[#allocation11 + $0xd8] sm:$0xff]
        %v978 = vld [vmem:[#allocation11 + $0xe0] sm:$0xff]
        %v979 = vld [vmem:[#allocation11 + $0xe8] sm:$0xff]
        %v980 = vld [vmem:[#allocation11 + $0xf0] sm:$0xff]
        %v981 = vld [vmem:[#allocation11 + $0xf8] sm:$0xff]
        %982 = vmatprep.subr.mxu0 %v951
        %983 = vmatpush1.msra.mxu0 %v950
        %984 = vmatprep.subr.mxu0 %v953
        %985 = vmatpush1.msra.mxu0 %v952
        %986 = vmatprep.subr.mxu0 %v955
        %987 = vmatpush1.msra.mxu0 %v954
        %988 = vmatprep.subr.mxu0 %v957
        %989 = vmatpush1.msra.mxu0 %v956
        %990 = vmatprep.subr.mxu0 %v959
        %991 = vmatpush1.msra.mxu0 %v958
        %992 = vmatprep.subr.mxu0 %v961
        %993 = vmatpush1.msra.mxu0 %v960
        %994 = vmatprep.subr.mxu0 %v963
        %995 = vmatpush1.msra.mxu0 %v962
        %996 = vmatprep.subr.mxu0 %v965
        %997 = vmatpush1.msra.mxu0 %v964
        %998 = vmatprep.subr.mxu0 %v967
        %999 = vmatpush1.msra.mxu0 %v966
        %1000 = vmatprep.subr.mxu0 %v969
        %1001 = vmatpush1.msra.mxu0 %v968
        %1002 = vmatprep.subr.mxu0 %v971
        %1003 = vmatpush1.msra.mxu0 %v970
        %1004 = vmatprep.subr.mxu0 %v973
        %1005 = vmatpush1.msra.mxu0 %v972
        %1006 = vmatprep.subr.mxu0 %v975
        %1007 = vmatpush1.msra.mxu0 %v974
        %1008 = vmatprep.subr.mxu0 %v977
        %1009 = vmatpush1.msra.mxu0 %v976
        %1010 = vmatprep.subr.mxu0 %v979
        %1011 = vmatpush1.msra.mxu0 %v978
        %1012 = vmatprep.subr.mxu0 %v981
        %1013 = vmatpush1.msra.mxu0 %v980
        %1014 = vmatprep.subr.mxu0 0.0
        %1015 = vmatpush1.msra.mxu0 0.0
        %1016 = vmatprep.subr.mxu0 0.0
        %1017 = vmatpush1.msra.mxu0 0.0
        %1018 = vmatprep.subr.mxu0 0.0
        %1019 = vmatpush1.msra.mxu0 0.0
        %1020 = vmatprep.subr.mxu0 0.0
        %1021 = vmatpush1.msra.mxu0 0.0
        %1022 = vmatprep.subr.mxu0 0.0
        %1023 = vmatpush1.msra.mxu0 0.0
        %1024 = vmatprep.subr.mxu0 0.0
        %1025 = vmatpush1.msra.mxu0 0.0
        %1026 = vmatprep.subr.mxu0 0.0
        %1027 = vmatpush1.msra.mxu0 0.0
        %1028 = vmatprep.subr.mxu0 0.0
        %1029 = vmatpush1.msra.mxu0 0.0
        %1030 = vmatprep.subr.mxu0 0.0
        %1031 = vmatpush1.msra.mxu0 0.0
        %1032 = vmatprep.subr.mxu0 0.0
        %1033 = vmatpush1.msra.mxu0 0.0
        %1034 = vmatprep.subr.mxu0 0.0
        %1035 = vmatpush1.msra.mxu0 0.0
        %1036 = vmatprep.subr.mxu0 0.0
        %1037 = vmatpush1.msra.mxu0 0.0
        %1038 = vmatprep.subr.mxu0 0.0
        %1039 = vmatpush1.msra.mxu0 0.0
        %1040 = vmatprep.subr.mxu0 0.0
        %1041 = vmatpush1.msra.mxu0 0.0
        %1042 = vmatprep.subr.mxu0 0.0
        %1043 = vmatpush1.msra.mxu0 0.0
        %1044 = vmatprep.subr.mxu0 0.0
        %1045 = vmatpush1.msra.mxu0 0.0
        %1046 = vmatprep.mubr.f32.mxu0 0.0
        %1047 = vmatmul.mubr.f32.gmra.mrb[0].mxu0 %v940
        %v1048 = vpop.f32.mrb[0].mxu0
        %v1049 = vadd.f32 0.0, %v1048
        %v1050 = vpop.f32.mrb[0].mxu0
        %v1051 = vadd.f32 0.0, %v1050
        %1052 = vmatprep.mubr.f32.mxu0 0.0
        %1053 = vmatmul.mubr.f32.gmra.mrb[0].mxu0 %v946
        %v1054 = vpop.f32.mrb[0].mxu0
        %v1055 = vadd.f32 0.0, %v1054
        %v1056 = vpop.f32.mrb[0].mxu0
        %v1057 = vadd.f32 0.0, %v1056
        %1058 = vdwg.mxu0
        %v1059 = vld [vmem:[#allocation13] sm:$0xff]
        %v1060 = vld [vmem:[#allocation13 + $0x8] sm:$0xff]
        %v1061 = vld [vmem:[#allocation13 + $0x10] sm:$0xff]
        %v1062 = vld [vmem:[#allocation13 + $0x18] sm:$0xff]
        %v1063 = vld [vmem:[#allocation13 + $0x20] sm:$0xff]
        %v1064 = vld [vmem:[#allocation13 + $0x28] sm:$0xff]
        %v1065 = vld [vmem:[#allocation13 + $0x30] sm:$0xff]
        %v1066 = vld [vmem:[#allocation13 + $0x38] sm:$0xff]
        %v1067 = vld [vmem:[#allocation13 + $0x40] sm:$0xff]
        %v1068 = vld [vmem:[#allocation13 + $0x48] sm:$0xff]
        %v1069 = vld [vmem:[#allocation13 + $0x50] sm:$0xff]
        %v1070 = vld [vmem:[#allocation13 + $0x58] sm:$0xff]
        %v1071 = vld [vmem:[#allocation13 + $0x60] sm:$0xff]
        %v1072 = vld [vmem:[#allocation13 + $0x68] sm:$0xff]
        %v1073 = vld [vmem:[#allocation13 + $0x70] sm:$0xff]
        %v1074 = vld [vmem:[#allocation13 + $0x78] sm:$0xff]
        %v1075 = vld [vmem:[#allocation13 + $0x80] sm:$0xff]
        %v1076 = vld [vmem:[#allocation13 + $0x88] sm:$0xff]
        %v1077 = vld [vmem:[#allocation13 + $0x90] sm:$0xff]
        %v1078 = vld [vmem:[#allocation13 + $0x98] sm:$0xff]
        %v1079 = vld [vmem:[#allocation13 + $0xa0] sm:$0xff]
        %v1080 = vld [vmem:[#allocation13 + $0xa8] sm:$0xff]
        %v1081 = vld [vmem:[#allocation13 + $0xb0] sm:$0xff]
        %v1082 = vld [vmem:[#allocation13 + $0xb8] sm:$0xff]
        %v1083 = vld [vmem:[#allocation13 + $0xc0] sm:$0xff]
        %v1084 = vld [vmem:[#allocation13 + $0xc8] sm:$0xff]
        %v1085 = vld [vmem:[#allocation13 + $0xd0] sm:$0xff]
        %v1086 = vld [vmem:[#allocation13 + $0xd8] sm:$0xff]
        %v1087 = vld [vmem:[#allocation13 + $0xe0] sm:$0xff]
        %v1088 = vld [vmem:[#allocation13 + $0xe8] sm:$0xff]
        %v1089 = vld [vmem:[#allocation13 + $0xf0] sm:$0xff]
        %v1090 = vld [vmem:[#allocation13 + $0xf8] sm:$0xff]
        %1091 = vmatprep.subr.mxu0 %v1060
        %1092 = vmatpush1.msra.mxu0 %v1059
        %1093 = vmatprep.subr.mxu0 %v1062
        %1094 = vmatpush1.msra.mxu0 %v1061
        %1095 = vmatprep.subr.mxu0 %v1064
        %1096 = vmatpush1.msra.mxu0 %v1063
        %1097 = vmatprep.subr.mxu0 %v1066
        %1098 = vmatpush1.msra.mxu0 %v1065
        %1099 = vmatprep.subr.mxu0 %v1068
        %1100 = vmatpush1.msra.mxu0 %v1067
        %1101 = vmatprep.subr.mxu0 %v1070
        %1102 = vmatpush1.msra.mxu0 %v1069
        %1103 = vmatprep.subr.mxu0 %v1072
        %1104 = vmatpush1.msra.mxu0 %v1071
        %1105 = vmatprep.subr.mxu0 %v1074
        %1106 = vmatpush1.msra.mxu0 %v1073
        %1107 = vmatprep.subr.mxu0 %v1076
        %1108 = vmatpush1.msra.mxu0 %v1075
        %1109 = vmatprep.subr.mxu0 %v1078
        %1110 = vmatpush1.msra.mxu0 %v1077
        %1111 = vmatprep.subr.mxu0 %v1080
        %1112 = vmatpush1.msra.mxu0 %v1079
        %1113 = vmatprep.subr.mxu0 %v1082
        %1114 = vmatpush1.msra.mxu0 %v1081
        %1115 = vmatprep.subr.mxu0 %v1084
        %1116 = vmatpush1.msra.mxu0 %v1083
        %1117 = vmatprep.subr.mxu0 %v1086
        %1118 = vmatpush1.msra.mxu0 %v1085
        %1119 = vmatprep.subr.mxu0 %v1088
        %1120 = vmatpush1.msra.mxu0 %v1087
        %1121 = vmatprep.subr.mxu0 %v1090
        %1122 = vmatpush1.msra.mxu0 %v1089
        %1123 = vmatprep.subr.mxu0 0.0
        %1124 = vmatpush1.msra.mxu0 0.0
        %1125 = vmatprep.subr.mxu0 0.0
        %1126 = vmatpush1.msra.mxu0 0.0
        %1127 = vmatprep.subr.mxu0 0.0
        %1128 = vmatpush1.msra.mxu0 0.0
        %1129 = vmatprep.subr.mxu0 0.0
        %1130 = vmatpush1.msra.mxu0 0.0
        %1131 = vmatprep.subr.mxu0 0.0
        %1132 = vmatpush1.msra.mxu0 0.0
        %1133 = vmatprep.subr.mxu0 0.0
        %1134 = vmatpush1.msra.mxu0 0.0
        %1135 = vmatprep.subr.mxu0 0.0
        %1136 = vmatpush1.msra.mxu0 0.0
        %1137 = vmatprep.subr.mxu0 0.0
        %1138 = vmatpush1.msra.mxu0 0.0
        %1139 = vmatprep.subr.mxu0 0.0
        %1140 = vmatpush1.msra.mxu0 0.0
        %1141 = vmatprep.subr.mxu0 0.0
        %1142 = vmatpush1.msra.mxu0 0.0
        %1143 = vmatprep.subr.mxu0 0.0
        %1144 = vmatpush1.msra.mxu0 0.0
        %1145 = vmatprep.subr.mxu0 0.0
        %1146 = vmatpush1.msra.mxu0 0.0
        %1147 = vmatprep.subr.mxu0 0.0
        %1148 = vmatpush1.msra.mxu0 0.0
        %1149 = vmatprep.subr.mxu0 0.0
        %1150 = vmatpush1.msra.mxu0 0.0
        %1151 = vmatprep.subr.mxu0 0.0
        %1152 = vmatpush1.msra.mxu0 0.0
        %1153 = vmatprep.subr.mxu0 0.0
        %1154 = vmatpush1.msra.mxu0 0.0
        %1155 = vmatprep.mubr.f32.mxu0 0.0
        %1156 = vmatmul.mubr.f32.gmra.mrb[0].mxu0 %v942
        %v1157 = vpop.f32.mrb[0].mxu0
        %v1158 = vadd.f32 0.0, %v1157
        %v1159 = vpop.f32.mrb[0].mxu0
        %v1160 = vadd.f32 0.0, %v1159
        %1161 = vmatprep.mubr.f32.mxu0 0.0
        %1162 = vmatmul.mubr.f32.gmra.mrb[0].mxu0 %v948
        %v1163 = vpop.f32.mrb[0].mxu0
        %v1164 = vadd.f32 0.0, %v1163
        %v1165 = vpop.f32.mrb[0].mxu0
        %v1166 = vadd.f32 0.0, %v1165
        %1167 = vdwg.mxu0
        %1168 = vst [vmem:[#allocation2] sm:$0xff] %v645
        %1169 = vst [vmem:[#allocation2 + $0x8] sm:$0xff] %v647
        %1170 = vst [vmem:[#allocation2 + $0x10] sm:$0xff] %v651
        %1171 = vst [vmem:[#allocation2 + $0x18] sm:$0xff] %v653
        %v1172 = vadd.f32 %v722, %v1049
        %v1173 = vadd.f32 %v724, %v1051
        %v1174 = vadd.f32 %v728, %v1055
        %v1175 = vadd.f32 %v730, %v1057
        %1176 = vst [vmem:[#allocation3] sm:$0xff] %v1172
        %1177 = vst [vmem:[#allocation3 + $0x8] sm:$0xff] %v1173
        %1178 = vst [vmem:[#allocation3 + $0x10] sm:$0xff] %v1174
        %1179 = vst [vmem:[#allocation3 + $0x18] sm:$0xff] %v1175
        %v1180 = vadd.f32 %v799, %v1158
        %v1181 = vadd.f32 %v801, %v1160
        %v1182 = vadd.f32 %v805, %v1164
        %v1183 = vadd.f32 %v807, %v1166
        %1184 = vst [vmem:[#allocation4] sm:$0xff] %v1180
        %1185 = vst [vmem:[#allocation4 + $0x8] sm:$0xff] %v1181
        %1186 = vst [vmem:[#allocation4 + $0x10] sm:$0xff] %v1182
        %1187 = vst [vmem:[#allocation4 + $0x18] sm:$0xff] %v1183
        %v1188 = vld [vmem:[#allocation2] sm:$0xff]
        %v1189 = vld [vmem:[#allocation2 + $0x10] sm:$0xff]
        %v1190 = vld [vmem:[#allocation3] sm:$0xff]
        %v1191 = vld [vmem:[#allocation3 + $0x10] sm:$0xff]
        %v1192 = vld [vmem:[#allocation4] sm:$0xff]
        %v1193 = vld [vmem:[#allocation4 + $0x10] sm:$0xff]
        %vm1194 = vcmask 523264
        %v1196 = vsel %vm1194, %v1188, 0
        %v1199 = vsel %vm1194, %v1189, 0
        %v1202 = vsel %vm1194, %v1190, 0
        %v1205 = vsel %vm1194, %v1191, 0
        %1207 = vmatprep.subr.mxu0 0.0
        %1208 = vmatpush1.xpose.msra.mxu0 %v1202
        %1209 = vmatprep.subr.mxu0 0.0
        %1210 = vmatpush1.xpose.msra.mxu0 %v1205
        %1211 = vmatprep.subr.mxu0 0.0
        %1212 = vmatpush1.xpose.msra.mxu0 0.0
        %1213 = vmatprep.subr.mxu0 0.0
        %1214 = vmatpush1.xpose.msra.mxu0 0.0
        %1215 = vmatprep.subr.mxu0 0.0
        %1216 = vmatpush1.xpose.msra.mxu0 0.0
        %1217 = vmatprep.subr.mxu0 0.0
        %1218 = vmatpush1.xpose.msra.mxu0 0.0
        %1219 = vmatprep.subr.mxu0 0.0
        %1220 = vmatpush1.xpose.msra.mxu0 0.0
        %1221 = vmatprep.subr.mxu0 0.0
        %1222 = vmatpush1.xpose.msra.mxu0 0.0
        %1223 = vmatprep.subr.mxu0 0.0
        %1224 = vmatpush1.xpose.msra.mxu0 0.0
        %1225 = vmatprep.subr.mxu0 0.0
        %1226 = vmatpush1.xpose.msra.mxu0 0.0
        %1227 = vmatprep.subr.mxu0 0.0
        %1228 = vmatpush1.xpose.msra.mxu0 0.0
        %1229 = vmatprep.subr.mxu0 0.0
        %1230 = vmatpush1.xpose.msra.mxu0 0.0
        %1231 = vmatprep.subr.mxu0 0.0
        %1232 = vmatpush1.xpose.msra.mxu0 0.0
        %1233 = vmatprep.subr.mxu0 0.0
        %1234 = vmatpush1.xpose.msra.mxu0 0.0
        %1235 = vmatprep.subr.mxu0 0.0
        %1236 = vmatpush1.xpose.msra.mxu0 0.0
        %1237 = vmatprep.subr.mxu0 0.0
        %1238 = vmatpush1.xpose.msra.mxu0 0.0
        %1239 = vmatprep.subr.mxu0 0.0
        %1240 = vmatpush1.xpose.msra.mxu0 0.0
        %1241 = vmatprep.subr.mxu0 0.0
        %1242 = vmatpush1.xpose.msra.mxu0 0.0
        %1243 = vmatprep.subr.mxu0 0.0
        %1244 = vmatpush1.xpose.msra.mxu0 0.0
        %1245 = vmatprep.subr.mxu0 0.0
        %1246 = vmatpush1.xpose.msra.mxu0 0.0
        %1247 = vmatprep.subr.mxu0 0.0
        %1248 = vmatpush1.xpose.msra.mxu0 0.0
        %1249 = vmatprep.subr.mxu0 0.0
        %1250 = vmatpush1.xpose.msra.mxu0 0.0
        %1251 = vmatprep.subr.mxu0 0.0
        %1252 = vmatpush1.xpose.msra.mxu0 0.0
        %1253 = vmatprep.subr.mxu0 0.0
        %1254 = vmatpush1.xpose.msra.mxu0 0.0
        %1255 = vmatprep.subr.mxu0 0.0
        %1256 = vmatpush1.xpose.msra.mxu0 0.0
        %1257 = vmatprep.subr.mxu0 0.0
        %1258 = vmatpush1.xpose.msra.mxu0 0.0
        %1259 = vmatprep.subr.mxu0 0.0
        %1260 = vmatpush1.xpose.msra.mxu0 0.0
        %1261 = vmatprep.subr.mxu0 0.0
        %1262 = vmatpush1.xpose.msra.mxu0 0.0
        %1263 = vmatprep.subr.mxu0 0.0
        %1264 = vmatpush1.xpose.msra.mxu0 0.0
        %1265 = vmatprep.subr.mxu0 0.0
        %1266 = vmatpush1.xpose.msra.mxu0 0.0
        %1267 = vmatprep.subr.mxu0 0.0
        %1268 = vmatpush1.xpose.msra.mxu0 0.0
        %1269 = vmatprep.subr.mxu0 0.0
        %1270 = vmatpush1.xpose.msra.mxu0 0.0
        %1271 = vmatprep.mubr.f32.mxu0 0.0
        %1272 = vmatmul.mubr.f32.gmra.mrb[0].mxu0 %v1196
        %v1273 = vpop.f32.mrb[0].mxu0
        %v1274 = vadd.f32 0.0, %v1273
        %v1275 = vpop.f32.mrb[0].mxu0
        %1276 = vmatprep.mubr.f32.mxu0 0.0
        %1277 = vmatmul.mubr.f32.gmra.mrb[0].mxu0 %v1199
        %v1278 = vpop.f32.mrb[0].mxu0
        %v1279 = vadd.f32 0.0, %v1278
        %v1280 = vpop.f32.mrb[0].mxu0
        %1281 = vdwg.mxu0
        %vm1282 = vcmask 130048
        %v1283 = vsel %vm1282, %v1274, -inf
        %1284 = vmax.xlane.f32.xlu0 %v1283
        %v1285 = vpop.xlane.xlu0 %1284
        %v1286 = vsel %vm1282, %v1279, -inf
        %1287 = vmax.xlane.f32.xlu0 %v1286
        %v1288 = vpop.xlane.xlu0 %1287
        %v1289 = vsub.f32 %v1274, %v1285
        %v1290 = vsub.f32 %v1279, %v1288
        %v1291 = vmul.f32 %v1289, 1.442695
        %v1292 = vpow.pop %v1291
        %v1293 = vmul.f32 %v1290, 1.442695
        %v1294 = vpow.pop %v1293
        %v1295 = vsel %vm1282, %v1292, 0.0
        %1296 = vadd.xlane.f32.xlu0 %v1295
        %v1297 = vpop.xlane.xlu0 %1296
        %v1298 = vsel %vm1282, %v1294, 0.0
        %1299 = vadd.xlane.f32.xlu0 %v1298
        %v1300 = vpop.xlane.xlu0 %1299
        %v1301 = vrcp.pop %v1297
        %v1302 = vrcp.pop %v1300
        %v1303 = vmul.f32 %v1292, %v1301
        %v1304 = vmul.f32 %v1294, %v1302
        %v1306 = vsel %vm1282, %v1303, 0
        %v1309 = vsel %vm1282, %v1304, 0
        %1311 = vmatprep.subr.mxu0 0.0
        %1312 = vmatpush1.msra.mxu0 %v1192
        %1313 = vmatprep.subr.mxu0 0.0
        %1314 = vmatpush1.msra.mxu0 %v1193
        %1315 = vmatprep.subr.mxu0 0.0
        %1316 = vmatpush1.msra.mxu0 0.0
        %1317 = vmatprep.subr.mxu0 0.0
        %1318 = vmatpush1.msra.mxu0 0.0
        %1319 = vmatprep.subr.mxu0 0.0
        %1320 = vmatpush1.msra.mxu0 0.0
        %1321 = vmatprep.subr.mxu0 0.0
        %1322 = vmatpush1.msra.mxu0 0.0
        %1323 = vmatprep.subr.mxu0 0.0
        %1324 = vmatpush1.msra.mxu0 0.0
        %1325 = vmatprep.subr.mxu0 0.0
        %1326 = vmatpush1.msra.mxu0 0.0
        %1327 = vmatprep.subr.mxu0 0.0
        %1328 = vmatpush1.msra.mxu0 0.0
        %1329 = vmatprep.subr.mxu0 0.0
        %1330 = vmatpush1.msra.mxu0 0.0
        %1331 = vmatprep.subr.mxu0 0.0
        %1332 = vmatpush1.msra.mxu0 0.0
        %1333 = vmatprep.subr.mxu0 0.0
        %1334 = vmatpush1.msra.mxu0 0.0
        %1335 = vmatprep.subr.mxu0 0.0
        %1336 = vmatpush1.msra.mxu0 0.0
        %1337 = vmatprep.subr.mxu0 0.0
        %1338 = vmatpush1.msra.mxu0 0.0
        %1339 = vmatprep.subr.mxu0 0.0
        %1340 = vmatpush1.msra.mxu0 0.0
        %1341 = vmatprep.subr.mxu0 0.0
        %1342 = vmatpush1.msra.mxu0 0.0
        %1343 = vmatprep.subr.mxu0 0.0
        %1344 = vmatpush1.msra.mxu0 0.0
        %1345 = vmatprep.subr.mxu0 0.0
        %1346 = vmatpush1.msra.mxu0 0.0
        %1347 = vmatprep.subr.mxu0 0.0
        %1348 = vmatpush1.msra.mxu0 0.0
        %1349 = vmatprep.subr.mxu0 0.0
        %1350 = vmatpush1.msra.mxu0 0.0
        %1351 = vmatprep.subr.mxu0 0.0
        %1352 = vmatpush1.msra.mxu0 0.0
        %1353 = vmatprep.subr.mxu0 0.0
        %1354 = vmatpush1.msra.mxu0 0.0
        %1355 = vmatprep.subr.mxu0 0.0
        %1356 = vmatpush1.msra.mxu0 0.0
        %1357 = vmatprep.subr.mxu0 0.0
        %1358 = vmatpush1.msra.mxu0 0.0
        %1359 = vmatprep.subr.mxu0 0.0
        %1360 = vmatpush1.msra.mxu0 0.0
        %1361 = vmatprep.subr.mxu0 0.0
        %1362 = vmatpush1.msra.mxu0 0.0
        %1363 = vmatprep.subr.mxu0 0.0
        %1364 = vmatpush1.msra.mxu0 0.0
        %1365 = vmatprep.subr.mxu0 0.0
        %1366 = vmatpush1.msra.mxu0 0.0
        %1367 = vmatprep.subr.mxu0 0.0
        %1368 = vmatpush1.msra.mxu0 0.0
        %1369 = vmatprep.subr.mxu0 0.0
        %1370 = vmatpush1.msra.mxu0 0.0
        %1371 = vmatprep.subr.mxu0 0.0
        %1372 = vmatpush1.msra.mxu0 0.0
        %1373 = vmatprep.subr.mxu0 0.0
        %1374 = vmatpush1.msra.mxu0 0.0
        %1375 = vmatprep.mubr.f32.mxu0 0.0
        %1376 = vmatmul.mubr.f32.gmra.mrb[0].mxu0 %v1306
        %v1377 = vpop.f32.mrb[0].mxu0
        %v1378 = vadd.f32 0.0, %v1377
        %v1379 = vpop.f32.mrb[0].mxu0
        %1380 = vmatprep.mubr.f32.mxu0 0.0
        %1381 = vmatmul.mubr.f32.gmra.mrb[0].mxu0 %v1309
        %v1382 = vpop.f32.mrb[0].mxu0
        %v1383 = vadd.f32 0.0, %v1382
        %v1384 = vpop.f32.mrb[0].mxu0
        %1385 = vdwg.mxu0
        %1386 = vrot.lane.b32.xlu0 %v1188, 64
        %v1387 = vpop.permute.xlu0 %1386
        %1388 = vrot.lane.b32.xlu0 %v1189, 64
        %v1389 = vpop.permute.xlu0 %1388
        %1390 = vrot.lane.b32.xlu0 %v1190, 64
        %v1391 = vpop.permute.xlu0 %1390
        %1392 = vrot.lane.b32.xlu0 %v1191, 64
        %v1393 = vpop.permute.xlu0 %1392
        %v1394 = vsel %vm1194, %v1387, 0
        %v1396 = vsel %vm1194, %v1389, 0
        %v1398 = vsel %vm1194, %v1391, 0
        %v1400 = vsel %vm1194, %v1393, 0
        %1402 = vmatprep.subr.mxu0 0.0
        %1403 = vmatpush1.xpose.msra.mxu0 %v1398
        %1404 = vmatprep.subr.mxu0 0.0
        %1405 = vmatpush1.xpose.msra.mxu0 %v1400
        %1406 = vmatprep.subr.mxu0 0.0
        %1407 = vmatpush1.xpose.msra.mxu0 0.0
        %1408 = vmatprep.subr.mxu0 0.0
        %1409 = vmatpush1.xpose.msra.mxu0 0.0
        %1410 = vmatprep.subr.mxu0 0.0
        %1411 = vmatpush1.xpose.msra.mxu0 0.0
        %1412 = vmatprep.subr.mxu0 0.0
        %1413 = vmatpush1.xpose.msra.mxu0 0.0
        %1414 = vmatprep.subr.mxu0 0.0
        %1415 = vmatpush1.xpose.msra.mxu0 0.0
        %1416 = vmatprep.subr.mxu0 0.0
        %1417 = vmatpush1.xpose.msra.mxu0 0.0
        %1418 = vmatprep.subr.mxu0 0.0
        %1419 = vmatpush1.xpose.msra.mxu0 0.0
        %1420 = vmatprep.subr.mxu0 0.0
        %1421 = vmatpush1.xpose.msra.mxu0 0.0
        %1422 = vmatprep.subr.mxu0 0.0
        %1423 = vmatpush1.xpose.msra.mxu0 0.0
        %1424 = vmatprep.subr.mxu0 0.0
        %1425 = vmatpush1.xpose.msra.mxu0 0.0
        %1426 = vmatprep.subr.mxu0 0.0
        %1427 = vmatpush1.xpose.msra.mxu0 0.0
        %1428 = vmatprep.subr.mxu0 0.0
        %1429 = vmatpush1.xpose.msra.mxu0 0.0
        %1430 = vmatprep.subr.mxu0 0.0
        %1431 = vmatpush1.xpose.msra.mxu0 0.0
        %1432 = vmatprep.subr.mxu0 0.0
        %1433 = vmatpush1.xpose.msra.mxu0 0.0
        %1434 = vmatprep.subr.mxu0 0.0
        %1435 = vmatpush1.xpose.msra.mxu0 0.0
        %1436 = vmatprep.subr.mxu0 0.0
        %1437 = vmatpush1.xpose.msra.mxu0 0.0
        %1438 = vmatprep.subr.mxu0 0.0
        %1439 = vmatpush1.xpose.msra.mxu0 0.0
        %1440 = vmatprep.subr.mxu0 0.0
        %1441 = vmatpush1.xpose.msra.mxu0 0.0
        %1442 = vmatprep.subr.mxu0 0.0
        %1443 = vmatpush1.xpose.msra.mxu0 0.0
        %1444 = vmatprep.subr.mxu0 0.0
        %1445 = vmatpush1.xpose.msra.mxu0 0.0
        %1446 = vmatprep.subr.mxu0 0.0
        %1447 = vmatpush1.xpose.msra.mxu0 0.0
        %1448 = vmatprep.subr.mxu0 0.0
        %1449 = vmatpush1.xpose.msra.mxu0 0.0
        %1450 = vmatprep.subr.mxu0 0.0
        %1451 = vmatpush1.xpose.msra.mxu0 0.0
        %1452 = vmatprep.subr.mxu0 0.0
        %1453 = vmatpush1.xpose.msra.mxu0 0.0
        %1454 = vmatprep.subr.mxu0 0.0
        %1455 = vmatpush1.xpose.msra.mxu0 0.0
        %1456 = vmatprep.subr.mxu0 0.0
        %1457 = vmatpush1.xpose.msra.mxu0 0.0
        %1458 = vmatprep.subr.mxu0 0.0
        %1459 = vmatpush1.xpose.msra.mxu0 0.0
        %1460 = vmatprep.subr.mxu0 0.0
        %1461 = vmatpush1.xpose.msra.mxu0 0.0
        %1462 = vmatprep.subr.mxu0 0.0
        %1463 = vmatpush1.xpose.msra.mxu0 0.0
        %1464 = vmatprep.subr.mxu0 0.0
        %1465 = vmatpush1.xpose.msra.mxu0 0.0
        %1466 = vmatprep.mubr.f32.mxu0 0.0
        %1467 = vmatmul.mubr.f32.gmra.mrb[0].mxu0 %v1394
        %v1468 = vpop.f32.mrb[0].mxu0
        %v1469 = vadd.f32 0.0, %v1468
        %v1470 = vpop.f32.mrb[0].mxu0
        %1471 = vmatprep.mubr.f32.mxu0 0.0
        %1472 = vmatmul.mubr.f32.gmra.mrb[0].mxu0 %v1396
        %v1473 = vpop.f32.mrb[0].mxu0
        %v1474 = vadd.f32 0.0, %v1473
        %v1475 = vpop.f32.mrb[0].mxu0
        %1476 = vdwg.mxu0
        %v1477 = vsel %vm1282, %v1469, -inf
        %1478 = vmax.xlane.f32.xlu0 %v1477
        %v1479 = vpop.xlane.xlu0 %1478
        %v1480 = vsel %vm1282, %v1474, -inf
        %1481 = vmax.xlane.f32.xlu0 %v1480
        %v1482 = vpop.xlane.xlu0 %1481
        %v1483 = vsub.f32 %v1469, %v1479
        %v1484 = vsub.f32 %v1474, %v1482
        %v1485 = vmul.f32 %v1483, 1.442695
        %v1486 = vpow.pop %v1485
        %v1487 = vmul.f32 %v1484, 1.442695
        %v1488 = vpow.pop %v1487
        %v1489 = vsel %vm1282, %v1486, 0.0
        %1490 = vadd.xlane.f32.xlu0 %v1489
        %v1491 = vpop.xlane.xlu0 %1490
        %v1492 = vsel %vm1282, %v1488, 0.0
        %1493 = vadd.xlane.f32.xlu0 %v1492
        %v1494 = vpop.xlane.xlu0 %1493
        %v1495 = vrcp.pop %v1491
        %v1496 = vrcp.pop %v1494
        %v1497 = vmul.f32 %v1486, %v1495
        %v1498 = vmul.f32 %v1488, %v1496
        %1501 = vrot.lane.b32.xlu0 %v1192, 64
        %v1502 = vpop.permute.xlu0 %1501
        %1503 = vrot.lane.b32.xlu0 %v1193, 64
        %v1504 = vpop.permute.xlu0 %1503
        %v1508 = vsel %vm1282, %v1497, 0
        %v1511 = vsel %vm1282, %v1498, 0
        %1513 = vmatprep.subr.mxu0 0.0
        %1514 = vmatpush1.msra.mxu0 %v1502
        %1515 = vmatprep.subr.mxu0 0.0
        %1516 = vmatpush1.msra.mxu0 %v1504
        %1517 = vmatprep.subr.mxu0 0.0
        %1518 = vmatpush1.msra.mxu0 0.0
        %1519 = vmatprep.subr.mxu0 0.0
        %1520 = vmatpush1.msra.mxu0 0.0
        %1521 = vmatprep.subr.mxu0 0.0
        %1522 = vmatpush1.msra.mxu0 0.0
        %1523 = vmatprep.subr.mxu0 0.0
        %1524 = vmatpush1.msra.mxu0 0.0
        %1525 = vmatprep.subr.mxu0 0.0
        %1526 = vmatpush1.msra.mxu0 0.0
        %1527 = vmatprep.subr.mxu0 0.0
        %1528 = vmatpush1.msra.mxu0 0.0
        %1529 = vmatprep.subr.mxu0 0.0
        %1530 = vmatpush1.msra.mxu0 0.0
        %1531 = vmatprep.subr.mxu0 0.0
        %1532 = vmatpush1.msra.mxu0 0.0
        %1533 = vmatprep.subr.mxu0 0.0
        %1534 = vmatpush1.msra.mxu0 0.0
        %1535 = vmatprep.subr.mxu0 0.0
        %1536 = vmatpush1.msra.mxu0 0.0
        %1537 = vmatprep.subr.mxu0 0.0
        %1538 = vmatpush1.msra.mxu0 0.0
        %1539 = vmatprep.subr.mxu0 0.0
        %1540 = vmatpush1.msra.mxu0 0.0
        %1541 = vmatprep.subr.mxu0 0.0
        %1542 = vmatpush1.msra.mxu0 0.0
        %1543 = vmatprep.subr.mxu0 0.0
        %1544 = vmatpush1.msra.mxu0 0.0
        %1545 = vmatprep.subr.mxu0 0.0
        %1546 = vmatpush1.msra.mxu0 0.0
        %1547 = vmatprep.subr.mxu0 0.0
        %1548 = vmatpush1.msra.mxu0 0.0
        %1549 = vmatprep.subr.mxu0 0.0
        %1550 = vmatpush1.msra.mxu0 0.0
        %1551 = vmatprep.subr.mxu0 0.0
        %1552 = vmatpush1.msra.mxu0 0.0
        %1553 = vmatprep.subr.mxu0 0.0
        %1554 = vmatpush1.msra.mxu0 0.0
        %1555 = vmatprep.subr.mxu0 0.0
        %1556 = vmatpush1.msra.mxu0 0.0
        %1557 = vmatprep.subr.mxu0 0.0
        %1558 = vmatpush1.msra.mxu0 0.0
        %1559 = vmatprep.subr.mxu0 0.0
        %1560 = vmatpush1.msra.mxu0 0.0
        %1561 = vmatprep.subr.mxu0 0.0
        %1562 = vmatpush1.msra.mxu0 0.0
        %1563 = vmatprep.subr.mxu0 0.0
        %1564 = vmatpush1.msra.mxu0 0.0
        %1565 = vmatprep.subr.mxu0 0.0
        %1566 = vmatpush1.msra.mxu0 0.0
        %1567 = vmatprep.subr.mxu0 0.0
        %1568 = vmatpush1.msra.mxu0 0.0
        %1569 = vmatprep.subr.mxu0 0.0
        %1570 = vmatpush1.msra.mxu0 0.0
        %1571 = vmatprep.subr.mxu0 0.0
        %1572 = vmatpush1.msra.mxu0 0.0
        %1573 = vmatprep.subr.mxu0 0.0
        %1574 = vmatpush1.msra.mxu0 0.0
        %1575 = vmatprep.subr.mxu0 0.0
        %1576 = vmatpush1.msra.mxu0 0.0
        %1577 = vmatprep.mubr.f32.mxu0 0.0
        %1578 = vmatmul.mubr.f32.gmra.mrb[0].mxu0 %v1508
        %v1579 = vpop.f32.mrb[0].mxu0
        %v1580 = vadd.f32 0.0, %v1579
        %v1581 = vpop.f32.mrb[0].mxu0
        %1582 = vmatprep.mubr.f32.mxu0 0.0
        %1583 = vmatmul.mubr.f32.gmra.mrb[0].mxu0 %v1511
        %v1584 = vpop.f32.mrb[0].mxu0
        %v1585 = vadd.f32 0.0, %v1584
        %v1586 = vpop.f32.mrb[0].mxu0
        %1587 = vdwg.mxu0
        %v1588 = vld [vmem:[#allocation2 + $0x8] sm:$0xff]
        %v1589 = vld [vmem:[#allocation2 + $0x18] sm:$0xff]
        %v1590 = vld [vmem:[#allocation3 + $0x8] sm:$0xff]
        %v1591 = vld [vmem:[#allocation3 + $0x18] sm:$0xff]
        %v1592 = vld [vmem:[#allocation4 + $0x8] sm:$0xff]
        %v1593 = vld [vmem:[#allocation4 + $0x18] sm:$0xff]
        %v1595 = vsel %vm1194, %v1588, 0
        %v1598 = vsel %vm1194, %v1589, 0
        %v1601 = vsel %vm1194, %v1590, 0
        %v1604 = vsel %vm1194, %v1591, 0
        %1606 = vmatprep.subr.mxu0 0.0
        %1607 = vmatpush1.xpose.msra.mxu0 %v1601
        %1608 = vmatprep.subr.mxu0 0.0
        %1609 = vmatpush1.xpose.msra.mxu0 %v1604
        %1610 = vmatprep.subr.mxu0 0.0
        %1611 = vmatpush1.xpose.msra.mxu0 0.0
        %1612 = vmatprep.subr.mxu0 0.0
        %1613 = vmatpush1.xpose.msra.mxu0 0.0
        %1614 = vmatprep.subr.mxu0 0.0
        %1615 = vmatpush1.xpose.msra.mxu0 0.0
        %1616 = vmatprep.subr.mxu0 0.0
        %1617 = vmatpush1.xpose.msra.mxu0 0.0
        %1618 = vmatprep.subr.mxu0 0.0
        %1619 = vmatpush1.xpose.msra.mxu0 0.0
        %1620 = vmatprep.subr.mxu0 0.0
        %1621 = vmatpush1.xpose.msra.mxu0 0.0
        %1622 = vmatprep.subr.mxu0 0.0
        %1623 = vmatpush1.xpose.msra.mxu0 0.0
        %1624 = vmatprep.subr.mxu0 0.0
        %1625 = vmatpush1.xpose.msra.mxu0 0.0
        %1626 = vmatprep.subr.mxu0 0.0
        %1627 = vmatpush1.xpose.msra.mxu0 0.0
        %1628 = vmatprep.subr.mxu0 0.0
        %1629 = vmatpush1.xpose.msra.mxu0 0.0
        %1630 = vmatprep.subr.mxu0 0.0
        %1631 = vmatpush1.xpose.msra.mxu0 0.0
        %1632 = vmatprep.subr.mxu0 0.0
        %1633 = vmatpush1.xpose.msra.mxu0 0.0
        %1634 = vmatprep.subr.mxu0 0.0
        %1635 = vmatpush1.xpose.msra.mxu0 0.0
        %1636 = vmatprep.subr.mxu0 0.0
        %1637 = vmatpush1.xpose.msra.mxu0 0.0
        %1638 = vmatprep.subr.mxu0 0.0
        %1639 = vmatpush1.xpose.msra.mxu0 0.0
        %1640 = vmatprep.subr.mxu0 0.0
        %1641 = vmatpush1.xpose.msra.mxu0 0.0
        %1642 = vmatprep.subr.mxu0 0.0
        %1643 = vmatpush1.xpose.msra.mxu0 0.0
        %1644 = vmatprep.subr.mxu0 0.0
        %1645 = vmatpush1.xpose.msra.mxu0 0.0
        %1646 = vmatprep.subr.mxu0 0.0
        %1647 = vmatpush1.xpose.msra.mxu0 0.0
        %1648 = vmatprep.subr.mxu0 0.0
        %1649 = vmatpush1.xpose.msra.mxu0 0.0
        %1650 = vmatprep.subr.mxu0 0.0
        %1651 = vmatpush1.xpose.msra.mxu0 0.0
        %1652 = vmatprep.subr.mxu0 0.0
        %1653 = vmatpush1.xpose.msra.mxu0 0.0
        %1654 = vmatprep.subr.mxu0 0.0
        %1655 = vmatpush1.xpose.msra.mxu0 0.0
        %1656 = vmatprep.subr.mxu0 0.0
        %1657 = vmatpush1.xpose.msra.mxu0 0.0
        %1658 = vmatprep.subr.mxu0 0.0
        %1659 = vmatpush1.xpose.msra.mxu0 0.0
        %1660 = vmatprep.subr.mxu0 0.0
        %1661 = vmatpush1.xpose.msra.mxu0 0.0
        %1662 = vmatprep.subr.mxu0 0.0
        %1663 = vmatpush1.xpose.msra.mxu0 0.0
        %1664 = vmatprep.subr.mxu0 0.0
        %1665 = vmatpush1.xpose.msra.mxu0 0.0
        %1666 = vmatprep.subr.mxu0 0.0
        %1667 = vmatpush1.xpose.msra.mxu0 0.0
        %1668 = vmatprep.subr.mxu0 0.0
        %1669 = vmatpush1.xpose.msra.mxu0 0.0
        %1670 = vmatprep.mubr.f32.mxu0 0.0
        %1671 = vmatmul.mubr.f32.gmra.mrb[0].mxu0 %v1595
        %v1672 = vpop.f32.mrb[0].mxu0
        %v1673 = vadd.f32 0.0, %v1672
        %v1674 = vpop.f32.mrb[0].mxu0
        %1675 = vmatprep.mubr.f32.mxu0 0.0
        %1676 = vmatmul.mubr.f32.gmra.mrb[0].mxu0 %v1598
        %v1677 = vpop.f32.mrb[0].mxu0
        %v1678 = vadd.f32 0.0, %v1677
        %v1679 = vpop.f32.mrb[0].mxu0
        %1680 = vdwg.mxu0
        %v1681 = vsel %vm1282, %v1673, -inf
        %1682 = vmax.xlane.f32.xlu0 %v1681
        %v1683 = vpop.xlane.xlu0 %1682
        %v1684 = vsel %vm1282, %v1678, -inf
        %1685 = vmax.xlane.f32.xlu0 %v1684
        %v1686 = vpop.xlane.xlu0 %1685
        %v1687 = vsub.f32 %v1673, %v1683
        %v1688 = vsub.f32 %v1678, %v1686
        %v1689 = vmul.f32 %v1687, 1.442695
        %v1690 = vpow.pop %v1689
        %v1691 = vmul.f32 %v1688, 1.442695
        %v1692 = vpow.pop %v1691
        %v1693 = vsel %vm1282, %v1690, 0.0
        %1694 = vadd.xlane.f32.xlu0 %v1693
        %v1695 = vpop.xlane.xlu0 %1694
        %v1696 = vsel %vm1282, %v1692, 0.0
        %1697 = vadd.xlane.f32.xlu0 %v1696
        %v1698 = vpop.xlane.xlu0 %1697
        %v1699 = vrcp.pop %v1695
        %v1700 = vrcp.pop %v1698
        %v1701 = vmul.f32 %v1690, %v1699
        %v1702 = vmul.f32 %v1692, %v1700
        %v1704 = vsel %vm1282, %v1701, 0
        %v1707 = vsel %vm1282, %v1702, 0
        %1709 = vmatprep.subr.mxu0 0.0
        %1710 = vmatpush1.msra.mxu0 %v1592
        %1711 = vmatprep.subr.mxu0 0.0
        %1712 = vmatpush1.msra.mxu0 %v1593
        %1713 = vmatprep.subr.mxu0 0.0
        %1714 = vmatpush1.msra.mxu0 0.0
        %1715 = vmatprep.subr.mxu0 0.0
        %1716 = vmatpush1.msra.mxu0 0.0
        %1717 = vmatprep.subr.mxu0 0.0
        %1718 = vmatpush1.msra.mxu0 0.0
        %1719 = vmatprep.subr.mxu0 0.0
        %1720 = vmatpush1.msra.mxu0 0.0
        %1721 = vmatprep.subr.mxu0 0.0
        %1722 = vmatpush1.msra.mxu0 0.0
        %1723 = vmatprep.subr.mxu0 0.0
        %1724 = vmatpush1.msra.mxu0 0.0
        %1725 = vmatprep.subr.mxu0 0.0
        %1726 = vmatpush1.msra.mxu0 0.0
        %1727 = vmatprep.subr.mxu0 0.0
        %1728 = vmatpush1.msra.mxu0 0.0
        %1729 = vmatprep.subr.mxu0 0.0
        %1730 = vmatpush1.msra.mxu0 0.0
        %1731 = vmatprep.subr.mxu0 0.0
        %1732 = vmatpush1.msra.mxu0 0.0
        %1733 = vmatprep.subr.mxu0 0.0
        %1734 = vmatpush1.msra.mxu0 0.0
        %1735 = vmatprep.subr.mxu0 0.0
        %1736 = vmatpush1.msra.mxu0 0.0
        %1737 = vmatprep.subr.mxu0 0.0
        %1738 = vmatpush1.msra.mxu0 0.0
        %1739 = vmatprep.subr.mxu0 0.0
        %1740 = vmatpush1.msra.mxu0 0.0
        %1741 = vmatprep.subr.mxu0 0.0
        %1742 = vmatpush1.msra.mxu0 0.0
        %1743 = vmatprep.subr.mxu0 0.0
        %1744 = vmatpush1.msra.mxu0 0.0
        %1745 = vmatprep.subr.mxu0 0.0
        %1746 = vmatpush1.msra.mxu0 0.0
        %1747 = vmatprep.subr.mxu0 0.0
        %1748 = vmatpush1.msra.mxu0 0.0
        %1749 = vmatprep.subr.mxu0 0.0
        %1750 = vmatpush1.msra.mxu0 0.0
        %1751 = vmatprep.subr.mxu0 0.0
        %1752 = vmatpush1.msra.mxu0 0.0
        %1753 = vmatprep.subr.mxu0 0.0
        %1754 = vmatpush1.msra.mxu0 0.0
        %1755 = vmatprep.subr.mxu0 0.0
        %1756 = vmatpush1.msra.mxu0 0.0
        %1757 = vmatprep.subr.mxu0 0.0
        %1758 = vmatpush1.msra.mxu0 0.0
        %1759 = vmatprep.subr.mxu0 0.0
        %1760 = vmatpush1.msra.mxu0 0.0
        %1761 = vmatprep.subr.mxu0 0.0
        %1762 = vmatpush1.msra.mxu0 0.0
        %1763 = vmatprep.subr.mxu0 0.0
        %1764 = vmatpush1.msra.mxu0 0.0
        %1765 = vmatprep.subr.mxu0 0.0
        %1766 = vmatpush1.msra.mxu0 0.0
        %1767 = vmatprep.subr.mxu0 0.0
        %1768 = vmatpush1.msra.mxu0 0.0
        %1769 = vmatprep.subr.mxu0 0.0
        %1770 = vmatpush1.msra.mxu0 0.0
        %1771 = vmatprep.subr.mxu0 0.0
        %1772 = vmatpush1.msra.mxu0 0.0
        %1773 = vmatprep.mubr.f32.mxu0 0.0
        %1774 = vmatmul.mubr.f32.gmra.mrb[0].mxu0 %v1704
        %v1775 = vpop.f32.mrb[0].mxu0
        %v1776 = vadd.f32 0.0, %v1775
        %v1777 = vpop.f32.mrb[0].mxu0
        %1778 = vmatprep.mubr.f32.mxu0 0.0
        %1779 = vmatmul.mubr.f32.gmra.mrb[0].mxu0 %v1707
        %v1780 = vpop.f32.mrb[0].mxu0
        %v1781 = vadd.f32 0.0, %v1780
        %v1782 = vpop.f32.mrb[0].mxu0
        %1783 = vdwg.mxu0
        %1784 = vrot.lane.b32.xlu0 %v1588, 64
        %v1785 = vpop.permute.xlu0 %1784
        %1786 = vrot.lane.b32.xlu0 %v1589, 64
        %v1787 = vpop.permute.xlu0 %1786
        %1788 = vrot.lane.b32.xlu0 %v1590, 64
        %v1789 = vpop.permute.xlu0 %1788
        %1790 = vrot.lane.b32.xlu0 %v1591, 64
        %v1791 = vpop.permute.xlu0 %1790
        %v1792 = vsel %vm1194, %v1785, 0
        %v1794 = vsel %vm1194, %v1787, 0
        %v1796 = vsel %vm1194, %v1789, 0
        %v1798 = vsel %vm1194, %v1791, 0
        %1800 = vmatprep.subr.mxu0 0.0
        %1801 = vmatpush1.xpose.msra.mxu0 %v1796
        %1802 = vmatprep.subr.mxu0 0.0
        %1803 = vmatpush1.xpose.msra.mxu0 %v1798
        %1804 = vmatprep.subr.mxu0 0.0
        %1805 = vmatpush1.xpose.msra.mxu0 0.0
        %1806 = vmatprep.subr.mxu0 0.0
        %1807 = vmatpush1.xpose.msra.mxu0 0.0
        %1808 = vmatprep.subr.mxu0 0.0
        %1809 = vmatpush1.xpose.msra.mxu0 0.0
        %1810 = vmatprep.subr.mxu0 0.0
        %1811 = vmatpush1.xpose.msra.mxu0 0.0
        %1812 = vmatprep.subr.mxu0 0.0
        %1813 = vmatpush1.xpose.msra.mxu0 0.0
        %1814 = vmatprep.subr.mxu0 0.0
        %1815 = vmatpush1.xpose.msra.mxu0 0.0
        %1816 = vmatprep.subr.mxu0 0.0
        %1817 = vmatpush1.xpose.msra.mxu0 0.0
        %1818 = vmatprep.subr.mxu0 0.0
        %1819 = vmatpush1.xpose.msra.mxu0 0.0
        %1820 = vmatprep.subr.mxu0 0.0
        %1821 = vmatpush1.xpose.msra.mxu0 0.0
        %1822 = vmatprep.subr.mxu0 0.0
        %1823 = vmatpush1.xpose.msra.mxu0 0.0
        %1824 = vmatprep.subr.mxu0 0.0
        %1825 = vmatpush1.xpose.msra.mxu0 0.0
        %1826 = vmatprep.subr.mxu0 0.0
        %1827 = vmatpush1.xpose.msra.mxu0 0.0
        %1828 = vmatprep.subr.mxu0 0.0
        %1829 = vmatpush1.xpose.msra.mxu0 0.0
        %1830 = vmatprep.subr.mxu0 0.0
        %1831 = vmatpush1.xpose.msra.mxu0 0.0
        %1832 = vmatprep.subr.mxu0 0.0
        %1833 = vmatpush1.xpose.msra.mxu0 0.0
        %1834 = vmatprep.subr.mxu0 0.0
        %1835 = vmatpush1.xpose.msra.mxu0 0.0
        %1836 = vmatprep.subr.mxu0 0.0
        %1837 = vmatpush1.xpose.msra.mxu0 0.0
        %1838 = vmatprep.subr.mxu0 0.0
        %1839 = vmatpush1.xpose.msra.mxu0 0.0
        %1840 = vmatprep.subr.mxu0 0.0
        %1841 = vmatpush1.xpose.msra.mxu0 0.0
        %1842 = vmatprep.subr.mxu0 0.0
        %1843 = vmatpush1.xpose.msra.mxu0 0.0
        %1844 = vmatprep.subr.mxu0 0.0
        %1845 = vmatpush1.xpose.msra.mxu0 0.0
        %1846 = vmatprep.subr.mxu0 0.0
        %1847 = vmatpush1.xpose.msra.mxu0 0.0
        %1848 = vmatprep.subr.mxu0 0.0
        %1849 = vmatpush1.xpose.msra.mxu0 0.0
        %1850 = vmatprep.subr.mxu0 0.0
        %1851 = vmatpush1.xpose.msra.mxu0 0.0
        %1852 = vmatprep.subr.mxu0 0.0
        %1853 = vmatpush1.xpose.msra.mxu0 0.0
        %1854 = vmatprep.subr.mxu0 0.0
        %1855 = vmatpush1.xpose.msra.mxu0 0.0
        %1856 = vmatprep.subr.mxu0 0.0
        %1857 = vmatpush1.xpose.msra.mxu0 0.0
        %1858 = vmatprep.subr.mxu0 0.0
        %1859 = vmatpush1.xpose.msra.mxu0 0.0
        %1860 = vmatprep.subr.mxu0 0.0
        %1861 = vmatpush1.xpose.msra.mxu0 0.0
        %1862 = vmatprep.subr.mxu0 0.0
        %1863 = vmatpush1.xpose.msra.mxu0 0.0
        %1864 = vmatprep.mubr.f32.mxu0 0.0
        %1865 = vmatmul.mubr.f32.gmra.mrb[0].mxu0 %v1792
        %v1866 = vpop.f32.mrb[0].mxu0
        %v1867 = vadd.f32 0.0, %v1866
        %v1868 = vpop.f32.mrb[0].mxu0
        %1869 = vmatprep.mubr.f32.mxu0 0.0
        %1870 = vmatmul.mubr.f32.gmra.mrb[0].mxu0 %v1794
        %v1871 = vpop.f32.mrb[0].mxu0
        %v1872 = vadd.f32 0.0, %v1871
        %v1873 = vpop.f32.mrb[0].mxu0
        %1874 = vdwg.mxu0
        %v1875 = vsel %vm1282, %v1867, -inf
        %1876 = vmax.xlane.f32.xlu0 %v1875
        %v1877 = vpop.xlane.xlu0 %1876
        %v1878 = vsel %vm1282, %v1872, -inf
        %1879 = vmax.xlane.f32.xlu0 %v1878
        %v1880 = vpop.xlane.xlu0 %1879
        %v1881 = vsub.f32 %v1867, %v1877
        %v1882 = vsub.f32 %v1872, %v1880
        %v1883 = vmul.f32 %v1881, 1.442695
        %v1884 = vpow.pop %v1883
        %v1885 = vmul.f32 %v1882, 1.442695
        %v1886 = vpow.pop %v1885
        %v1887 = vsel %vm1282, %v1884, 0.0
        %1888 = vadd.xlane.f32.xlu0 %v1887
        %v1889 = vpop.xlane.xlu0 %1888
        %v1890 = vsel %vm1282, %v1886, 0.0
        %1891 = vadd.xlane.f32.xlu0 %v1890
        %v1892 = vpop.xlane.xlu0 %1891
        %v1893 = vrcp.pop %v1889
        %v1894 = vrcp.pop %v1892
        %v1895 = vmul.f32 %v1884, %v1893
        %v1896 = vmul.f32 %v1886, %v1894
        %1899 = vrot.lane.b32.xlu0 %v1592, 64
        %v1900 = vpop.permute.xlu0 %1899
        %1901 = vrot.lane.b32.xlu0 %v1593, 64
        %v1902 = vpop.permute.xlu0 %1901
        %v1906 = vsel %vm1282, %v1895, 0
        %v1909 = vsel %vm1282, %v1896, 0
        %1911 = vmatprep.subr.mxu0 0.0
        %1912 = vmatpush1.msra.mxu0 %v1900
        %1913 = vmatprep.subr.mxu0 0.0
        %1914 = vmatpush1.msra.mxu0 %v1902
        %1915 = vmatprep.subr.mxu0 0.0
        %1916 = vmatpush1.msra.mxu0 0.0
        %1917 = vmatprep.subr.mxu0 0.0
        %1918 = vmatpush1.msra.mxu0 0.0
        %1919 = vmatprep.subr.mxu0 0.0
        %1920 = vmatpush1.msra.mxu0 0.0
        %1921 = vmatprep.subr.mxu0 0.0
        %1922 = vmatpush1.msra.mxu0 0.0
        %1923 = vmatprep.subr.mxu0 0.0
        %1924 = vmatpush1.msra.mxu0 0.0
        %1925 = vmatprep.subr.mxu0 0.0
        %1926 = vmatpush1.msra.mxu0 0.0
        %1927 = vmatprep.subr.mxu0 0.0
        %1928 = vmatpush1.msra.mxu0 0.0
        %1929 = vmatprep.subr.mxu0 0.0
        %1930 = vmatpush1.msra.mxu0 0.0
        %1931 = vmatprep.subr.mxu0 0.0
        %1932 = vmatpush1.msra.mxu0 0.0
        %1933 = vmatprep.subr.mxu0 0.0
        %1934 = vmatpush1.msra.mxu0 0.0
        %1935 = vmatprep.subr.mxu0 0.0
        %1936 = vmatpush1.msra.mxu0 0.0
        %1937 = vmatprep.subr.mxu0 0.0
        %1938 = vmatpush1.msra.mxu0 0.0
        %1939 = vmatprep.subr.mxu0 0.0
        %1940 = vmatpush1.msra.mxu0 0.0
        %1941 = vmatprep.subr.mxu0 0.0
        %1942 = vmatpush1.msra.mxu0 0.0
        %1943 = vmatprep.subr.mxu0 0.0
        %1944 = vmatpush1.msra.mxu0 0.0
        %1945 = vmatprep.subr.mxu0 0.0
        %1946 = vmatpush1.msra.mxu0 0.0
        %1947 = vmatprep.subr.mxu0 0.0
        %1948 = vmatpush1.msra.mxu0 0.0
        %1949 = vmatprep.subr.mxu0 0.0
        %1950 = vmatpush1.msra.mxu0 0.0
        %1951 = vmatprep.subr.mxu0 0.0
        %1952 = vmatpush1.msra.mxu0 0.0
        %1953 = vmatprep.subr.mxu0 0.0
        %1954 = vmatpush1.msra.mxu0 0.0
        %1955 = vmatprep.subr.mxu0 0.0
        %1956 = vmatpush1.msra.mxu0 0.0
        %1957 = vmatprep.subr.mxu0 0.0
        %1958 = vmatpush1.msra.mxu0 0.0
        %1959 = vmatprep.subr.mxu0 0.0
        %1960 = vmatpush1.msra.mxu0 0.0
        %1961 = vmatprep.subr.mxu0 0.0
        %1962 = vmatpush1.msra.mxu0 0.0
        %1963 = vmatprep.subr.mxu0 0.0
        %1964 = vmatpush1.msra.mxu0 0.0
        %1965 = vmatprep.subr.mxu0 0.0
        %1966 = vmatpush1.msra.mxu0 0.0
        %1967 = vmatprep.subr.mxu0 0.0
        %1968 = vmatpush1.msra.mxu0 0.0
        %1969 = vmatprep.subr.mxu0 0.0
        %1970 = vmatpush1.msra.mxu0 0.0
        %1971 = vmatprep.subr.mxu0 0.0
        %1972 = vmatpush1.msra.mxu0 0.0
        %1973 = vmatprep.subr.mxu0 0.0
        %1974 = vmatpush1.msra.mxu0 0.0
        %1975 = vmatprep.mubr.f32.mxu0 0.0
        %1976 = vmatmul.mubr.f32.gmra.mrb[0].mxu0 %v1906
        %v1977 = vpop.f32.mrb[0].mxu0
        %v1978 = vadd.f32 0.0, %v1977
        %v1979 = vpop.f32.mrb[0].mxu0
        %1980 = vmatprep.mubr.f32.mxu0 0.0
        %1981 = vmatmul.mubr.f32.gmra.mrb[0].mxu0 %v1909
        %v1982 = vpop.f32.mrb[0].mxu0
        %v1983 = vadd.f32 0.0, %v1982
        %v1984 = vpop.f32.mrb[0].mxu0
        %1985 = vdwg.mxu0
        %1988 = vrot.lane.b32.xlu0 %v1580, 64
        %v1989 = vpop.permute.xlu0 %1988
        %1990 = vrot.lane.b32.xlu0 %v1585, 64
        %v1991 = vpop.permute.xlu0 %1990
        %1996 = vrot.lane.b32.xlu0 %v1978, 64
        %v1997 = vpop.permute.xlu0 %1996
        %1998 = vrot.lane.b32.xlu0 %v1983, 64
        %v1999 = vpop.permute.xlu0 %1998
        %v2002 = vsel %vm1194, %v1378, %v1989
        %v2003 = vsel %vm1194, %v1383, %v1991
        %v2004 = vsel %vm1194, %v1776, %v1997
        %v2005 = vsel %vm1194, %v1781, %v1999
        %v2006 = vld [vmem:[#allocation14] sm:$0xff]
        %v2007 = vld [vmem:[#allocation14 + $0x8] sm:$0xff]
        %v2008 = vld [vmem:[#allocation14 + $0x10] sm:$0xff]
        %v2009 = vld [vmem:[#allocation14 + $0x18] sm:$0xff]
        %v2010 = vld [vmem:[#allocation14 + $0x20] sm:$0xff]
        %v2011 = vld [vmem:[#allocation14 + $0x28] sm:$0xff]
        %v2012 = vld [vmem:[#allocation14 + $0x30] sm:$0xff]
        %v2013 = vld [vmem:[#allocation14 + $0x38] sm:$0xff]
        %v2014 = vld [vmem:[#allocation14 + $0x40] sm:$0xff]
        %v2015 = vld [vmem:[#allocation14 + $0x48] sm:$0xff]
        %v2016 = vld [vmem:[#allocation14 + $0x50] sm:$0xff]
        %v2017 = vld [vmem:[#allocation14 + $0x58] sm:$0xff]
        %v2018 = vld [vmem:[#allocation14 + $0x60] sm:$0xff]
        %v2019 = vld [vmem:[#allocation14 + $0x68] sm:$0xff]
        %v2020 = vld [vmem:[#allocation14 + $0x70] sm:$0xff]
        %v2021 = vld [vmem:[#allocation14 + $0x78] sm:$0xff]
        %v2022 = vld [vmem:[#allocation14 + $0x80] sm:$0xff]
        %v2023 = vld [vmem:[#allocation14 + $0x88] sm:$0xff]
        %v2024 = vld [vmem:[#allocation14 + $0x90] sm:$0xff]
        %v2025 = vld [vmem:[#allocation14 + $0x98] sm:$0xff]
        %v2026 = vld [vmem:[#allocation14 + $0xa0] sm:$0xff]
        %v2027 = vld [vmem:[#allocation14 + $0xa8] sm:$0xff]
        %v2028 = vld [vmem:[#allocation14 + $0xb0] sm:$0xff]
        %v2029 = vld [vmem:[#allocation14 + $0xb8] sm:$0xff]
        %v2030 = vld [vmem:[#allocation14 + $0xc0] sm:$0xff]
        %v2031 = vld [vmem:[#allocation14 + $0xc8] sm:$0xff]
        %v2032 = vld [vmem:[#allocation14 + $0xd0] sm:$0xff]
        %v2033 = vld [vmem:[#allocation14 + $0xd8] sm:$0xff]
        %v2034 = vld [vmem:[#allocation14 + $0xe0] sm:$0xff]
        %v2035 = vld [vmem:[#allocation14 + $0xe8] sm:$0xff]
        %v2036 = vld [vmem:[#allocation14 + $0xf0] sm:$0xff]
        %v2037 = vld [vmem:[#allocation14 + $0xf8] sm:$0xff]
        %v2038 = vld [vmem:[#allocation14 + $0x100] sm:$0xff]
        %v2039 = vld [vmem:[#allocation14 + $0x108] sm:$0xff]
        %v2040 = vld [vmem:[#allocation14 + $0x110] sm:$0xff]
        %v2041 = vld [vmem:[#allocation14 + $0x118] sm:$0xff]
        %v2042 = vld [vmem:[#allocation14 + $0x120] sm:$0xff]
        %v2043 = vld [vmem:[#allocation14 + $0x128] sm:$0xff]
        %v2044 = vld [vmem:[#allocation14 + $0x130] sm:$0xff]
        %v2045 = vld [vmem:[#allocation14 + $0x138] sm:$0xff]
        %v2046 = vld [vmem:[#allocation14 + $0x140] sm:$0xff]
        %v2047 = vld [vmem:[#allocation14 + $0x148] sm:$0xff]
        %v2048 = vld [vmem:[#allocation14 + $0x150] sm:$0xff]
        %v2049 = vld [vmem:[#allocation14 + $0x158] sm:$0xff]
        %v2050 = vld [vmem:[#allocation14 + $0x160] sm:$0xff]
        %v2051 = vld [vmem:[#allocation14 + $0x168] sm:$0xff]
        %v2052 = vld [vmem:[#allocation14 + $0x170] sm:$0xff]
        %v2053 = vld [vmem:[#allocation14 + $0x178] sm:$0xff]
        %v2054 = vld [vmem:[#allocation14 + $0x180] sm:$0xff]
        %v2055 = vld [vmem:[#allocation14 + $0x188] sm:$0xff]
        %v2056 = vld [vmem:[#allocation14 + $0x190] sm:$0xff]
        %v2057 = vld [vmem:[#allocation14 + $0x198] sm:$0xff]
        %v2058 = vld [vmem:[#allocation14 + $0x1a0] sm:$0xff]
        %v2059 = vld [vmem:[#allocation14 + $0x1a8] sm:$0xff]
        %v2060 = vld [vmem:[#allocation14 + $0x1b0] sm:$0xff]
        %v2061 = vld [vmem:[#allocation14 + $0x1b8] sm:$0xff]
        %v2062 = vld [vmem:[#allocation14 + $0x1c0] sm:$0xff]
        %v2063 = vld [vmem:[#allocation14 + $0x1c8] sm:$0xff]
        %v2064 = vld [vmem:[#allocation14 + $0x1d0] sm:$0xff]
        %v2065 = vld [vmem:[#allocation14 + $0x1d8] sm:$0xff]
        %v2066 = vld [vmem:[#allocation14 + $0x1e0] sm:$0xff]
        %v2067 = vld [vmem:[#allocation14 + $0x1e8] sm:$0xff]
        %v2068 = vld [vmem:[#allocation14 + $0x1f0] sm:$0xff]
        %v2069 = vld [vmem:[#allocation14 + $0x1f8] sm:$0xff]
        %v2070 = vld [vmem:[#allocation16] sm:$0x3]
        %v2072 = vlaneseq
        %v2073 = vshrl.u32 %v2072, 7
        %v2074 = vsub.s32 0, %v2073
        %v2075 = vrot.slane %v2070, %v2074
        %v2076 = vlaneseq
        %v2077 = vshrl.u32 %v2076, 7
        %v2078 = vsub.s32 1, %v2077
        %v2079 = vrot.slane %v2070, %v2078
        %2082 = vmatprep.subr.mxu0 %v2007
        %2083 = vmatpush1.msra.mxu0 %v2006
        %2084 = vmatprep.subr.mxu0 %v2009
        %2085 = vmatpush1.msra.mxu0 %v2008
        %2086 = vmatprep.subr.mxu0 %v2011
        %2087 = vmatpush1.msra.mxu0 %v2010
        %2088 = vmatprep.subr.mxu0 %v2013
        %2089 = vmatpush1.msra.mxu0 %v2012
        %2090 = vmatprep.subr.mxu0 %v2015
        %2091 = vmatpush1.msra.mxu0 %v2014
        %2092 = vmatprep.subr.mxu0 %v2017
        %2093 = vmatpush1.msra.mxu0 %v2016
        %2094 = vmatprep.subr.mxu0 %v2019
        %2095 = vmatpush1.msra.mxu0 %v2018
        %2096 = vmatprep.subr.mxu0 %v2021
        %2097 = vmatpush1.msra.mxu0 %v2020
        %2098 = vmatprep.subr.mxu0 %v2023
        %2099 = vmatpush1.msra.mxu0 %v2022
        %2100 = vmatprep.subr.mxu0 %v2025
        %2101 = vmatpush1.msra.mxu0 %v2024
        %2102 = vmatprep.subr.mxu0 %v2027
        %2103 = vmatpush1.msra.mxu0 %v2026
        %2104 = vmatprep.subr.mxu0 %v2029
        %2105 = vmatpush1.msra.mxu0 %v2028
        %2106 = vmatprep.subr.mxu0 %v2031
        %2107 = vmatpush1.msra.mxu0 %v2030
        %2108 = vmatprep.subr.mxu0 %v2033
        %2109 = vmatpush1.msra.mxu0 %v2032
        %2110 = vmatprep.subr.mxu0 %v2035
        %2111 = vmatpush1.msra.mxu0 %v2034
        %2112 = vmatprep.subr.mxu0 %v2037
        %2113 = vmatpush1.msra.mxu0 %v2036
        %2114 = vmatprep.subr.mxu0 %v2039
        %2115 = vmatpush1.msra.mxu0 %v2038
        %2116 = vmatprep.subr.mxu0 %v2041
        %2117 = vmatpush1.msra.mxu0 %v2040
        %2118 = vmatprep.subr.mxu0 %v2043
        %2119 = vmatpush1.msra.mxu0 %v2042
        %2120 = vmatprep.subr.mxu0 %v2045
        %2121 = vmatpush1.msra.mxu0 %v2044
        %2122 = vmatprep.subr.mxu0 %v2047
        %2123 = vmatpush1.msra.mxu0 %v2046
        %2124 = vmatprep.subr.mxu0 %v2049
        %2125 = vmatpush1.msra.mxu0 %v2048
        %2126 = vmatprep.subr.mxu0 %v2051
        %2127 = vmatpush1.msra.mxu0 %v2050
        %2128 = vmatprep.subr.mxu0 %v2053
        %2129 = vmatpush1.msra.mxu0 %v2052
        %2130 = vmatprep.subr.mxu0 %v2055
        %2131 = vmatpush1.msra.mxu0 %v2054
        %2132 = vmatprep.subr.mxu0 %v2057
        %2133 = vmatpush1.msra.mxu0 %v2056
        %2134 = vmatprep.subr.mxu0 %v2059
        %2135 = vmatpush1.msra.mxu0 %v2058
        %2136 = vmatprep.subr.mxu0 %v2061
        %2137 = vmatpush1.msra.mxu0 %v2060
        %2138 = vmatprep.subr.mxu0 %v2063
        %2139 = vmatpush1.msra.mxu0 %v2062
        %2140 = vmatprep.subr.mxu0 %v2065
        %2141 = vmatpush1.msra.mxu0 %v2064
        %2142 = vmatprep.subr.mxu0 %v2067
        %2143 = vmatpush1.msra.mxu0 %v2066
        %2144 = vmatprep.subr.mxu0 %v2069
        %2145 = vmatpush1.msra.mxu0 %v2068
        %2146 = vmatprep.mubr.f32.mxu0 %v2004
        %2147 = vmatmul.mubr.f32.gmra.mrb[0].mxu0 %v2002
        %v2148 = vpop.f32.mrb[0].mxu0
        %v2149 = vadd.f32 %v2075, %v2148
        %v2150 = vpop.f32.mrb[0].mxu0
        %v2151 = vadd.f32 %v2079, %v2150
        %2152 = vmatprep.mubr.f32.mxu0 %v2005
        %2153 = vmatmul.mubr.f32.gmra.mrb[0].mxu0 %v2003
        %v2154 = vpop.f32.mrb[0].mxu0
        %v2155 = vadd.f32 %v2075, %v2154
        %v2156 = vpop.f32.mrb[0].mxu0
        %v2157 = vadd.f32 %v2079, %v2156
        %2158 = vdwg.mxu0
        %2159 = vst [vmem:[%s381] sm:$0xff] %v2149
        %2160 = vst [vmem:[%s381 + $0x8] sm:$0xff] %v2151
        %2161 = vst [vmem:[%s381 + $0x10] sm:$0xff] %v2155
        %2162 = vst [vmem:[%s381 + $0x18] sm:$0xff] %v2157
        %s2163 = sand.u32 %s187, 1
        %s2164 = scalar_lea.sflag [#allocation7], %s2163
        %s2165 = sand.u32 %s187, 1
        %s2166 = smul.addr %s2165, 32
        %s2167 = scalar_lea.vmem [#allocation17], %s2166
        // Predicated region
        $region77: #{attention_lora_forward.1} parent=47 // pred_check
          %p2168 = pneg %p197
        $region78: #{attention_lora_forward.1} parent=47 // pred_check_branch
          %2170 = sbr.rel (%p2168) target = $region80
        $region79: #{attention_lora_forward.1} parent=47 // pred_region
          %s2172 = ssub.s32 512, 512
          %2173 = vsyncadd %s2164, %s2172
          %s2174 = smul.addr %s27, 4
          %s2175 = smul.addr %s2174, 128
          %s2176 = scalar_lea.hbm %s7, %s2175
          %s2177 = sshll.u32 %s2167, 4
          %s2178 = int_to_ptr.vmem [resolvable:$true] %s2177
          %2183 = dma.vmem_to_hbm [thread:$0]  %s2178, 512, %s2176, %s2164, 256, 256, 16
        $region80: #{attention_lora_forward.1} parent=47 // pred_fallthru
          _
      $region48: #{attention_lora_forward.1} parent=5 // pred_fallthru
        _
      %p2184 = scmp.le.s32.totalorder 2, %s22
      // Predicated region
      $region81: #{attention_lora_forward.1} parent=5 // pred_check
        %p2185 = pneg %p2184
      $region82: #{attention_lora_forward.1} parent=5 // pred_check_branch
        %2187 = sbr.rel (%p2185) target = $region84
      $region83: #{attention_lora_forward.1} parent=5 // pred_region
        %s2188 = ssub.s32 %s22, 2
        // Predicated region
        $region85: #{attention_lora_forward.1} parent=83 // pred_check
          %p2189 = pneg %p203
        $region86: #{attention_lora_forward.1} parent=83 // pred_check_branch
          %2191 = sbr.rel (%p2189) target = $region88
        $region87: #{attention_lora_forward.1} parent=83 // pred_region
          %s2192 = sand.u32 %s188, 1
          %s2193 = scalar_lea.sflag [#allocation7], %s2192
          %s2194 = sand.u32 %s188, 1
          %s2195 = smul.addr %s2194, 32
          %s2196 = scalar_lea.vmem [#allocation17], %s2195
          %2197 = dma.done %s2193, 512
        $region88: #{attention_lora_forward.1} parent=83 // pred_fallthru
          _
      $region84: #{attention_lora_forward.1} parent=5 // pred_fallthru
        _
    $region6: #{attention_lora_forward.1} parent=1 // loop_footer
      %s26 = sadd.s32 1, %s22
    $region7: #{attention_lora_forward.1} parent=1 // loop_footer_branch
      %21 = sbr.rel target = $region3
    $region8: #{attention_lora_forward.1} parent=1 // loop_exit
      _
    %2198 = vsyncpa [#allocation6], 1
    %s2199 = scalar_lea.sflag [#allocation6], 1
    %2200 = vsyncpa %s2199, 1
    %2201 = vsyncpa [#allocation9], 1
    %2202 = vsyncpa [#allocation12], 1
    %2203 = vsyncpa [#allocation15], 1
    %2204 = vsyncpa [#allocation7], 1
    %s2205 = scalar_lea.sflag [#allocation7], 1
    %2206 = vsyncpa %s2205, 1

</llo_original>
